<compile_context>
chip_gen: v7x
topology: tpu7x:2x2x1
jax: 0.10.0
libtpu: 0.0.40
codegen_flags: <defaults>
</compile_context>

<pallas_src>
import functools

import jax
import jax.numpy as jnp
from jax.experimental import pallas as pl
from jax.experimental.pallas import tpu as pltpu

LANE = 128      # vreg lane width (last dim)
SUBLANE = 8     # vreg sublane width (second-to-last dim)


def _round_up(x, m):
    return ((x + m - 1) // m) * m


# ----------------------------- Pallas kernel -------------------------------


def _quad_embed_kernel(x1_ref, x2_ref, x3_ref, x4_ref,
                       w1_ref, b1_ref, w2_ref, b2_ref,
                       o1_ref, o2_ref, o3_ref, o4_ref):
    """One row tile of the fused 2-layer MLP, applied to all four inputs.

    Shapes (weight/bias/output trailing dims padded to 128 -> lane-dense,
    unmasked stores, full MXU columns):
      x:(TM, Dp)  w1:(Dp, Hp)  b1:(1, Hp)  w2:(Hp, Ep)  b2:(1, Ep)  o:(TM, Ep)
    """
    w1 = w1_ref[...]
    b1 = b1_ref[...]
    w2 = w2_ref[...]
    b2 = b2_ref[...]
    # Static 4x unroll: same resident weights, four independent row tiles.
    for x_ref, o_ref in ((x1_ref, o1_ref), (x2_ref, o2_ref),
                         (x3_ref, o3_ref), (x4_ref, o4_ref)):
        # Layer 1: MXU matmul, f32 accumulation; bias + ReLU on the VPU in f32
        # (v5e VALUs have no bf16 path, and the kernel is HBM-bound anyway).
        h = jnp.dot(x_ref[...], w1, preferred_element_type=jnp.float32)
        h = jnp.maximum(h + b1, 0.0)
        # Layer 2: second MXU pass + bias.
        out = jnp.dot(h.astype(w2.dtype), w2,
                      preferred_element_type=jnp.float32)
        o_ref[...] = (out + b2).astype(o_ref.dtype)


# ------------------------- parameter preparation ----------------------------


def prepare_embedding_params(w1, b1, w2, b2):
    """Zero-pad weights/biases to 128-lane multiples ONCE, at init time.

    Zero padding keeps the math exact: padded hidden units see zero weights
    and zero bias (ReLU(0) = 0) and padded output columns are exact zeros.
    Returns (padded_params, emb) where `emb` is the true embedding width.
    """
    d_in, hid = w1.shape
    emb = w2.shape[1]
    d_pad = _round_up(d_in, LANE)
    h_pad = _round_up(hid, LANE)
    e_pad = _round_up(emb, LANE)
    w1_p = jnp.pad(w1, ((0, d_pad - d_in), (0, h_pad - hid)))
    b1_p = jnp.pad(b1.reshape(1, -1), ((0, 0), (0, h_pad - hid)))
    w2_p = jnp.pad(w2, ((0, h_pad - hid), (0, e_pad - emb)))
    b2_p = jnp.pad(b2.reshape(1, -1), ((0, 0), (0, e_pad - emb)))
    return (w1_p, b1_p, w2_p, b2_p), emb


# --------------------------- Quadruplet wrapper -----------------------------


def _pick_row_tile(n_rows, row_tile, min_steps):
    """Row tile: full extent for tiny batches, else a sublane multiple chosen
    so the grid has >= min_steps steps (lets v7x's two TCs both stream)."""
    if n_rows <= SUBLANE:
        return n_rows                      # full-extent block; grid = (1,)
    tm = min(row_tile, _round_up(pl.cdiv(n_rows, min_steps), SUBLANE))
    return max(SUBLANE, tm)


def quadruplet_forward(padded_params, i1, i2, i3, i4, *, emb,
                       row_tile=256, min_grid_steps=4):
    """Quadruplet.forward: shared embeddingNet on each of the four inputs.

    `padded_params` come from prepare_embedding_params (lane-padded).
    Effective rows streamed per grid step = 4 * row_tile (four inputs).
    """
    w1_p, b1_p, w2_p, b2_p = padded_params
    d_pad, h_pad = w1_p.shape
    e_pad = w2_p.shape[1]
    n_rows = i1.shape[0]

    # Flatten NCHW -> (B, Din): contiguous row-major reshape, no HBM copy.
    xs = [x.reshape(n_rows, -1) for x in (i1, i2, i3, i4)]
    d_in = xs[0].shape[1]

    # Only pad x columns when Din is not already a lane multiple (no-op here,
    # Din = 1024); rows are never padded.
    if d_in != d_pad:
        xs = [jnp.pad(x, ((0, 0), (0, d_pad - d_in))) for x in xs]

    tm = _pick_row_tile(n_rows, row_tile, min_grid_steps)
    grid = (pl.cdiv(n_rows, tm),)

    x_spec = pl.BlockSpec((tm, d_pad), lambda i: (i, 0))      # streamed rows
    o_spec = pl.BlockSpec((tm, e_pad), lambda i: (i, 0))
    resident = lambda i: (0, 0)                               # VMEM-resident

    outs = pl.pallas_call(
        _quad_embed_kernel,
        out_shape=tuple(
            jax.ShapeDtypeStruct((n_rows, e_pad), i1.dtype) for _ in range(4)
        ),
        grid_spec=pltpu.PrefetchScalarGridSpec(
            num_scalar_prefetch=0,
            grid=grid,
            in_specs=[
                x_spec, x_spec, x_spec, x_spec,
                pl.BlockSpec((d_pad, h_pad), resident),       # w1
                pl.BlockSpec((1, h_pad), resident),           # b1
                pl.BlockSpec((h_pad, e_pad), resident),       # w2
                pl.BlockSpec((1, e_pad), resident),           # b2
            ],
            out_specs=[o_spec, o_spec, o_spec, o_spec],
        ),
        compiler_params=pltpu.CompilerParams(
            # Row tiles are independent -> shard across v7x's two TensorCores.
            dimension_semantics=("parallel",),
            # Big-tile pipeline headroom on v5e (16 MiB scoped default).
            vmem_limit_bytes=32 * 1024 * 1024,
        ),
    )(*xs, w1_p, b1_p, w2_p, b2_p)

    # Single column slice back to the true embedding width.  Padding columns
    # are exact zeros, so downstream consumers could equally take the padded
    # slab and slice lazily.
    return tuple(o[:, :emb] for o in outs)


# ------------------------------- reference ---------------------------------


def embedding_net_ref(x_flat, w1, b1, w2, b2):
    h = jnp.maximum(x_flat @ w1 + b1, 0.0)
    return h @ w2 + b2


# --------------------------------- main -------------------------------------

if __name__ == "__main__":
    # Small shapes consistent with an image-embedding forward.
    B, C, H, W = 2, 4, 16, 16          # NCHW inputs
    D_IN = C * H * W                   # 1024
    HID = 32
    EMB = 16

    key = jax.random.PRNGKey(0)
    k_w1, k_b1, k_w2, k_b2, k1, k2, k3, k4 = jax.random.split(key, 8)

    # Deterministic synthetic parameters for the embedding net.
    w1 = jax.random.normal(k_w1, (D_IN, HID), jnp.float32) * (1.0 / jnp.sqrt(D_IN))
    b1 = jax.random.normal(k_b1, (1, HID), jnp.float32) * 0.01
    w2 = jax.random.normal(k_w2, (HID, EMB), jnp.float32) * (1.0 / jnp.sqrt(HID))
    b2 = jax.random.normal(k_b2, (1, EMB), jnp.float32) * 0.01

    # One-time, init-time lane padding of the shared embedding-net params.
    padded_params, emb_dim = prepare_embedding_params(w1, b1, w2, b2)

    # Four quadruplet inputs (NCHW, like the PyTorch module expects).
    i1 = jax.random.normal(k1, (B, C, H, W), jnp.float32)
    i2 = jax.random.normal(k2, (B, C, H, W), jnp.float32)
    i3 = jax.random.normal(k3, (B, C, H, W), jnp.float32)
    i4 = jax.random.normal(k4, (B, C, H, W), jnp.float32)

    fwd = jax.jit(functools.partial(quadruplet_forward, emb=emb_dim))
    e1, e2, e3, e4 = jax.block_until_ready(fwd(padded_params, i1, i2, i3, i4))

    # Correctness check against a pure-JAX reference of the same embedding net.
    for x, e in zip((i1, i2, i3, i4), (e1, e2, e3, e4)):
        ref = embedding_net_ref(x.reshape(B, -1), w1, b1, w2, b2)
        assert e.shape == (B, EMB)
        assert jnp.allclose(e, ref, atol=1e-4, rtol=1e-4), "mismatch vs reference"

    print("KERNEL_OK")
</pallas_src>

<mosaic_0001>
module attributes {stable_mosaic.version = 11 : i64} {
  func.func @_quad_embed_kernel(%arg0: i32, %arg1: memref<2x1024xf32, #tpu.memory_space<vmem>>, %arg2: memref<2x1024xf32, #tpu.memory_space<vmem>>, %arg3: memref<2x1024xf32, #tpu.memory_space<vmem>>, %arg4: memref<2x1024xf32, #tpu.memory_space<vmem>>, %arg5: memref<1024x128xf32, #tpu.memory_space<vmem>>, %arg6: memref<1x128xf32, #tpu.memory_space<vmem>>, %arg7: memref<128x128xf32, #tpu.memory_space<vmem>>, %arg8: memref<1x128xf32, #tpu.memory_space<vmem>>, %arg9: memref<2x128xf32, #tpu.memory_space<vmem>>, %arg10: memref<2x128xf32, #tpu.memory_space<vmem>>, %arg11: memref<2x128xf32, #tpu.memory_space<vmem>>, %arg12: memref<2x128xf32, #tpu.memory_space<vmem>>) attributes {dimension_semantics = [#tpu.dimension_semantics<parallel>], iteration_bounds = array<i64: 1>, scalar_prefetch = 0 : i64, scratch_operands = 0 : i64, tpu.core_type = #tpu.core_type<tc>, window_params = [{transform_indices = @transform_0, window_bounds = array<i64: 2, 1024>}, {transform_indices = @transform_1, window_bounds = array<i64: 2, 1024>}, {transform_indices = @transform_2, window_bounds = array<i64: 2, 1024>}, {transform_indices = @transform_3, window_bounds = array<i64: 2, 1024>}, {pipeline_mode = #tpu.pipeline_mode<synchronous>, transform_indices = @transform_4, window_bounds = array<i64: 1024, 128>}, {pipeline_mode = #tpu.pipeline_mode<synchronous>, transform_indices = @transform_5, window_bounds = array<i64: 1, 128>}, {pipeline_mode = #tpu.pipeline_mode<synchronous>, transform_indices = @transform_6, window_bounds = array<i64: 128, 128>}, {pipeline_mode = #tpu.pipeline_mode<synchronous>, transform_indices = @transform_7, window_bounds = array<i64: 1, 128>}, {transform_indices = @transform_8, window_bounds = array<i64: 2, 128>}, {transform_indices = @transform_9, window_bounds = array<i64: 2, 128>}, {transform_indices = @transform_10, window_bounds = array<i64: 2, 128>}, {transform_indices = @transform_11, window_bounds = array<i64: 2, 128>}]} {
    %c0 = arith.constant 0 : index
    %c0_0 = arith.constant 0 : index
    %0 = vector.load %arg5[%c0, %c0_0] : memref<1024x128xf32, #tpu.memory_space<vmem>>, vector<1024x128xf32>
    %c0_1 = arith.constant 0 : index
    %c0_2 = arith.constant 0 : index
    %1 = vector.load %arg6[%c0_1, %c0_2] : memref<1x128xf32, #tpu.memory_space<vmem>>, vector<1x128xf32>
    %c0_3 = arith.constant 0 : index
    %c0_4 = arith.constant 0 : index
    %2 = vector.load %arg7[%c0_3, %c0_4] : memref<128x128xf32, #tpu.memory_space<vmem>>, vector<128x128xf32>
    %c0_5 = arith.constant 0 : index
    %c0_6 = arith.constant 0 : index
    %3 = vector.load %arg8[%c0_5, %c0_6] : memref<1x128xf32, #tpu.memory_space<vmem>>, vector<1x128xf32>
    %c0_7 = arith.constant 0 : index
    %c0_8 = arith.constant 0 : index
    %4 = vector.load %arg1[%c0_7, %c0_8] : memref<2x1024xf32, #tpu.memory_space<vmem>>, vector<2x1024xf32>
    %cst = arith.constant dense<0.000000e+00> : vector<2x128xf32>
    %5 = tpu.matmul %4, %0, %cst {dimension_numbers = #tpu.dot_dimension_numbers<[1], [0], [0], [1], [0, 0, 1, 1], [], []>} : vector<2x1024xf32>, vector<1024x128xf32>, vector<2x128xf32> -> vector<2x128xf32>
    %6 = vector.broadcast %1 : vector<1x128xf32> to vector<2x128xf32>
    %7 = arith.addf %5, %6 : vector<2x128xf32>
    %cst_9 = arith.constant 0.000000e+00 : f32
    %8 = vector.broadcast %cst_9 : f32 to vector<2x128xf32>
    %9 = arith.maximumf %7, %8 : vector<2x128xf32>
    %cst_10 = arith.constant dense<0.000000e+00> : vector<2x128xf32>
    %10 = tpu.matmul %9, %2, %cst_10 {dimension_numbers = #tpu.dot_dimension_numbers<[1], [0], [0], [1], [0, 0, 1, 1], [], []>} : vector<2x128xf32>, vector<128x128xf32>, vector<2x128xf32> -> vector<2x128xf32>
    %11 = vector.broadcast %3 : vector<1x128xf32> to vector<2x128xf32>
    %12 = arith.addf %10, %11 : vector<2x128xf32>
    %c0_11 = arith.constant 0 : index
    %c0_12 = arith.constant 0 : index
    %13 = vector.load %arg9[%c0_11, %c0_12] : memref<2x128xf32, #tpu.memory_space<vmem>>, vector<2x128xf32>
    tpu.vector_store %arg9[%c0_11, %c0_12], %12 {strides = array<i32>} : memref<2x128xf32, #tpu.memory_space<vmem>>, vector<2x128xf32>,
    %c0_13 = arith.constant 0 : index
    %c0_14 = arith.constant 0 : index
    %14 = vector.load %arg2[%c0_13, %c0_14] : memref<2x1024xf32, #tpu.memory_space<vmem>>, vector<2x1024xf32>
    %cst_15 = arith.constant dense<0.000000e+00> : vector<2x128xf32>
    %15 = tpu.matmul %14, %0, %cst_15 {dimension_numbers = #tpu.dot_dimension_numbers<[1], [0], [0], [1], [0, 0, 1, 1], [], []>} : vector<2x1024xf32>, vector<1024x128xf32>, vector<2x128xf32> -> vector<2x128xf32>
    %16 = vector.broadcast %1 : vector<1x128xf32> to vector<2x128xf32>
    %17 = arith.addf %15, %16 : vector<2x128xf32>
    %cst_16 = arith.constant 0.000000e+00 : f32
    %18 = vector.broadcast %cst_16 : f32 to vector<2x128xf32>
    %19 = arith.maximumf %17, %18 : vector<2x128xf32>
    %cst_17 = arith.constant dense<0.000000e+00> : vector<2x128xf32>
    %20 = tpu.matmul %19, %2, %cst_17 {dimension_numbers = #tpu.dot_dimension_numbers<[1], [0], [0], [1], [0, 0, 1, 1], [], []>} : vector<2x128xf32>, vector<128x128xf32>, vector<2x128xf32> -> vector<2x128xf32>
    %21 = vector.broadcast %3 : vector<1x128xf32> to vector<2x128xf32>
    %22 = arith.addf %20, %21 : vector<2x128xf32>
    %c0_18 = arith.constant 0 : index
    %c0_19 = arith.constant 0 : index
    %23 = vector.load %arg10[%c0_18, %c0_19] : memref<2x128xf32, #tpu.memory_space<vmem>>, vector<2x128xf32>
    tpu.vector_store %arg10[%c0_18, %c0_19], %22 {strides = array<i32>} : memref<2x128xf32, #tpu.memory_space<vmem>>, vector<2x128xf32>,
    %c0_20 = arith.constant 0 : index
    %c0_21 = arith.constant 0 : index
    %24 = vector.load %arg3[%c0_20, %c0_21] : memref<2x1024xf32, #tpu.memory_space<vmem>>, vector<2x1024xf32>
    %cst_22 = arith.constant dense<0.000000e+00> : vector<2x128xf32>
    %25 = tpu.matmul %24, %0, %cst_22 {dimension_numbers = #tpu.dot_dimension_numbers<[1], [0], [0], [1], [0, 0, 1, 1], [], []>} : vector<2x1024xf32>, vector<1024x128xf32>, vector<2x128xf32> -> vector<2x128xf32>
    %26 = vector.broadcast %1 : vector<1x128xf32> to vector<2x128xf32>
    %27 = arith.addf %25, %26 : vector<2x128xf32>
    %cst_23 = arith.constant 0.000000e+00 : f32
    %28 = vector.broadcast %cst_23 : f32 to vector<2x128xf32>
    %29 = arith.maximumf %27, %28 : vector<2x128xf32>
    %cst_24 = arith.constant dense<0.000000e+00> : vector<2x128xf32>
    %30 = tpu.matmul %29, %2, %cst_24 {dimension_numbers = #tpu.dot_dimension_numbers<[1], [0], [0], [1], [0, 0, 1, 1], [], []>} : vector<2x128xf32>, vector<128x128xf32>, vector<2x128xf32> -> vector<2x128xf32>
    %31 = vector.broadcast %3 : vector<1x128xf32> to vector<2x128xf32>
    %32 = arith.addf %30, %31 : vector<2x128xf32>
    %c0_25 = arith.constant 0 : index
    %c0_26 = arith.constant 0 : index
    %33 = vector.load %arg11[%c0_25, %c0_26] : memref<2x128xf32, #tpu.memory_space<vmem>>, vector<2x128xf32>
    tpu.vector_store %arg11[%c0_25, %c0_26], %32 {strides = array<i32>} : memref<2x128xf32, #tpu.memory_space<vmem>>, vector<2x128xf32>,
    %c0_27 = arith.constant 0 : index
    %c0_28 = arith.constant 0 : index
    %34 = vector.load %arg4[%c0_27, %c0_28] : memref<2x1024xf32, #tpu.memory_space<vmem>>, vector<2x1024xf32>
    %cst_29 = arith.constant dense<0.000000e+00> : vector<2x128xf32>
    %35 = tpu.matmul %34, %0, %cst_29 {dimension_numbers = #tpu.dot_dimension_numbers<[1], [0], [0], [1], [0, 0, 1, 1], [], []>} : vector<2x1024xf32>, vector<1024x128xf32>, vector<2x128xf32> -> vector<2x128xf32>
    %36 = vector.broadcast %1 : vector<1x128xf32> to vector<2x128xf32>
    %37 = arith.addf %35, %36 : vector<2x128xf32>
    %cst_30 = arith.constant 0.000000e+00 : f32
    %38 = vector.broadcast %cst_30 : f32 to vector<2x128xf32>
    %39 = arith.maximumf %37, %38 : vector<2x128xf32>
    %cst_31 = arith.constant dense<0.000000e+00> : vector<2x128xf32>
    %40 = tpu.matmul %39, %2, %cst_31 {dimension_numbers = #tpu.dot_dimension_numbers<[1], [0], [0], [1], [0, 0, 1, 1], [], []>} : vector<2x128xf32>, vector<128x128xf32>, vector<2x128xf32> -> vector<2x128xf32>
    %41 = vector.broadcast %3 : vector<1x128xf32> to vector<2x128xf32>
    %42 = arith.addf %40, %41 : vector<2x128xf32>
    %c0_32 = arith.constant 0 : index
    %c0_33 = arith.constant 0 : index
    %43 = vector.load %arg12[%c0_32, %c0_33] : memref<2x128xf32, #tpu.memory_space<vmem>>, vector<2x128xf32>
    tpu.vector_store %arg12[%c0_32, %c0_33], %42 {strides = array<i32>} : memref<2x128xf32, #tpu.memory_space<vmem>>, vector<2x128xf32>,
    return
  }
  func.func @transform_0(%arg0: i32) -> (i32, i32) {
    %c0_i32 = arith.constant 0 : i32
    %c0_i32_0 = arith.constant 0 : i32
    return %arg0, %c0_i32 : i32, i32
  }
  func.func @transform_1(%arg0: i32) -> (i32, i32) {
    %c0_i32 = arith.constant 0 : i32
    %c0_i32_0 = arith.constant 0 : i32
    return %arg0, %c0_i32 : i32, i32
  }
  func.func @transform_2(%arg0: i32) -> (i32, i32) {
    %c0_i32 = arith.constant 0 : i32
    %c0_i32_0 = arith.constant 0 : i32
    return %arg0, %c0_i32 : i32, i32
  }
  func.func @transform_3(%arg0: i32) -> (i32, i32) {
    %c0_i32 = arith.constant 0 : i32
    %c0_i32_0 = arith.constant 0 : i32
    return %arg0, %c0_i32 : i32, i32
  }
  func.func @transform_4(%arg0: i32) -> (i32, i32) {
    %c0_i32 = arith.constant 0 : i32
    %c0_i32_0 = arith.constant 0 : i32
    %c0_i32_1 = arith.constant 0 : i32
    return %c0_i32, %c0_i32_0 : i32, i32
  }
  func.func @transform_5(%arg0: i32) -> (i32, i32) {
    %c0_i32 = arith.constant 0 : i32
    %c0_i32_0 = arith.constant 0 : i32
    %c0_i32_1 = arith.constant 0 : i32
    return %c0_i32, %c0_i32_0 : i32, i32
  }
  func.func @transform_6(%arg0: i32) -> (i32, i32) {
    %c0_i32 = arith.constant 0 : i32
    %c0_i32_0 = arith.constant 0 : i32
    %c0_i32_1 = arith.constant 0 : i32
    return %c0_i32, %c0_i32_0 : i32, i32
  }
  func.func @transform_7(%arg0: i32) -> (i32, i32) {
    %c0_i32 = arith.constant 0 : i32
    %c0_i32_0 = arith.constant 0 : i32
    %c0_i32_1 = arith.constant 0 : i32
    return %c0_i32, %c0_i32_0 : i32, i32
  }
  func.func @transform_8(%arg0: i32) -> (i32, i32) {
    %c0_i32 = arith.constant 0 : i32
    %c0_i32_0 = arith.constant 0 : i32
    return %arg0, %c0_i32 : i32, i32
  }
  func.func @transform_9(%arg0: i32) -> (i32, i32) {
    %c0_i32 = arith.constant 0 : i32
    %c0_i32_0 = arith.constant 0 : i32
    return %arg0, %c0_i32 : i32, i32
  }
  func.func @transform_10(%arg0: i32) -> (i32, i32) {
    %c0_i32 = arith.constant 0 : i32
    %c0_i32_0 = arith.constant 0 : i32
    return %arg0, %c0_i32 : i32, i32
  }
  func.func @transform_11(%arg0: i32) -> (i32, i32) {
    %c0_i32 = arith.constant 0 : i32
    %c0_i32_0 = arith.constant 0 : i32
    return %arg0, %c0_i32 : i32, i32
  }
}

</mosaic_0001>

<llo_original>
// kernel: quadruplet_forward.1
$region0: #{quadruplet_forward.1}
  #allocation0 [shape = 'u32[]', space=smem, size = 0x4, offset = 0x4, fixed_abs, tag = 'smem constant byte address 0x4 - core index']
  #allocation1 [shape = 'u32[144,128]{1,0:T(1,128)}', space=vmem, size = 0x12000, scoped, tag = 'internal scratch']
  %s0 = inlined_call_operand.vmem [shape: f32[2,1024], index: 0, kind: input, shape index: {}]
  %s1 = inlined_call_operand.vmem [shape: f32[2,1024], index: 1, kind: input, shape index: {}]
  %s2 = inlined_call_operand.vmem [shape: f32[2,1024], index: 2, kind: input, shape index: {}]
  %s3 = inlined_call_operand.vmem [shape: f32[2,1024], index: 3, kind: input, shape index: {}]
  %s4 = inlined_call_operand.hbm [shape: f32[1024,128], index: 4, kind: input, shape index: {}]
  %s5 = inlined_call_operand.vmem [shape: f32[1,128], index: 5, kind: input, shape index: {}]
  %s6 = inlined_call_operand.vmem [shape: f32[128,128], index: 6, kind: input, shape index: {}]
  %s7 = inlined_call_operand.vmem [shape: f32[1,128], index: 7, kind: input, shape index: {}]
  %s8 = inlined_call_operand.hbm [shape: f32[2,128], index: 8, kind: output, shape index: {0}]
  %s9 = inlined_call_operand.hbm [shape: f32[2,128], index: 9, kind: output, shape index: {1}]
  %s10 = inlined_call_operand.hbm [shape: f32[2,128], index: 10, kind: output, shape index: {2}]
  %s11 = inlined_call_operand.hbm [shape: f32[2,128], index: 11, kind: output, shape index: {3}]
  %12 = xla_tuple %s8, %s9, %s10, %s11
  %s13 = sld [smem:[#allocation0]]
  $region70: #{quadruplet_forward.1} parent=0
    _
  %s15 = ssub.s32 1, %s13
  %s16 = scalar_select 0, %s15, %s13
  $region1: #{quadruplet_forward.1} parent=0
    #allocation2 [shape = 'u8[524288]{0}', space=vmem, size = 0x80000, scoped, tag = 'input window, operand 4, single buffered']
    #allocation3 [shape = 's32[1]{0}', space=sflag, size = 0x4, scoped, tag = 'scoped memory for quadruplet_forward.1']
    #allocation4 [shape = 's32[1]{0}', space=sflag, size = 0x4, scoped, tag = 'scoped memory for quadruplet_forward.1']
    #allocation5 [shape = 'u8[1024]{0}', space=vmem, size = 0x400, scoped, tag = 'output window, operand 0, single buffered']
    #allocation6 [shape = 'u8[1024]{0}', space=vmem, size = 0x400, scoped, tag = 'output window, operand 1, single buffered']
    #allocation7 [shape = 's32[1]{0}', space=sflag, size = 0x4, scoped, tag = 'scoped memory for quadruplet_forward.1']
    #allocation8 [shape = 'u8[1024]{0}', space=vmem, size = 0x400, scoped, tag = 'output window, operand 2, single buffered']
    #allocation9 [shape = 'u8[1024]{0}', space=vmem, size = 0x400, scoped, tag = 'output window, operand 3, single buffered']
    #allocation10 [shape = 's32[1]{0}', space=sflag, size = 0x4, scoped, tag = 'scoped memory for quadruplet_forward.1']
    %17 = vsyncpa [#allocation3], 0
    %18 = vsyncpa [#allocation4], 0
    %19 = vsyncpa [#allocation7], 0
    %20 = vsyncpa [#allocation10], 0
    // Predicated region
    $region2: #{quadruplet_forward.1} parent=1 // pred_check
      _
    $region3: #{quadruplet_forward.1} parent=1 // pred_check_branch
      %22 = sbr.rel (0) target = $region5
    $region4: #{quadruplet_forward.1} parent=1 // pred_region
      _
    $region5: #{quadruplet_forward.1} parent=1 // pred_fallthru
      _
    // Predicated region
    $region6: #{quadruplet_forward.1} parent=1 // pred_check
      _
    $region7: #{quadruplet_forward.1} parent=1 // pred_check_branch
      %24 = sbr.rel (0) target = $region9
    $region8: #{quadruplet_forward.1} parent=1 // pred_region
      _
    $region9: #{quadruplet_forward.1} parent=1 // pred_fallthru
      _
    // Predicated region
    $region10: #{quadruplet_forward.1} parent=1 // pred_check
      _
    $region11: #{quadruplet_forward.1} parent=1 // pred_check_branch
      %26 = sbr.rel (0) target = $region13
    $region12: #{quadruplet_forward.1} parent=1 // pred_region
      _
    $region13: #{quadruplet_forward.1} parent=1 // pred_fallthru
      _
    // Predicated region
    $region14: #{quadruplet_forward.1} parent=1 // pred_check
      _
    $region15: #{quadruplet_forward.1} parent=1 // pred_check_branch
      %28 = sbr.rel (0) target = $region17
    $region16: #{quadruplet_forward.1} parent=1 // pred_region
      _
    $region17: #{quadruplet_forward.1} parent=1 // pred_fallthru
      _
    // Predicated region
    $region18: #{quadruplet_forward.1} parent=1 // pred_check
      _
    $region19: #{quadruplet_forward.1} parent=1 // pred_check_branch
      %30 = sbr.rel (0) target = $region21
    $region20: #{quadruplet_forward.1} parent=1 // pred_region
      %s32 = ssub.s32 16384, 16384
      %33 = vsyncadd [#allocation3], %s32
      %s34 = sshll.u32 [#allocation2], 4
      %s35 = int_to_ptr.vmem [resolvable:$true] %s34
      %40 = dma.hbm_to_vmem [thread:$0]  %s4, 16384, %s35, [#allocation3], 128, 128, 8
    $region21: #{quadruplet_forward.1} parent=1 // pred_fallthru
      _
    // Predicated region
    $region22: #{quadruplet_forward.1} parent=1 // pred_check
      _
    $region23: #{quadruplet_forward.1} parent=1 // pred_check_branch
      %42 = sbr.rel (0) target = $region25
    $region24: #{quadruplet_forward.1} parent=1 // pred_region
      _
    $region25: #{quadruplet_forward.1} parent=1 // pred_fallthru
      _
    // Predicated region
    $region26: #{quadruplet_forward.1} parent=1 // pred_check
      _
    $region27: #{quadruplet_forward.1} parent=1 // pred_check_branch
      %44 = sbr.rel (0) target = $region29
    $region28: #{quadruplet_forward.1} parent=1 // pred_region
      _
    $region29: #{quadruplet_forward.1} parent=1 // pred_fallthru
      _
    // Predicated region
    $region30: #{quadruplet_forward.1} parent=1 // pred_check
      _
    $region31: #{quadruplet_forward.1} parent=1 // pred_check_branch
      %46 = sbr.rel (0) target = $region33
    $region32: #{quadruplet_forward.1} parent=1 // pred_region
      _
    $region33: #{quadruplet_forward.1} parent=1 // pred_fallthru
      _
    // Predicated region
    $region34: #{quadruplet_forward.1} parent=1 // pred_check
      _
    $region35: #{quadruplet_forward.1} parent=1 // pred_check_branch
      %48 = sbr.rel (0) target = $region37
    $region36: #{quadruplet_forward.1} parent=1 // pred_region
      %49 = dma.done [#allocation3], 16384
    $region37: #{quadruplet_forward.1} parent=1 // pred_fallthru
      _
    %v50 = vld [vmem:[#allocation2] sm:$0xff]
    %v51 = vld [vmem:[#allocation2 + $0x8] sm:$0xff]
    %v52 = vld [vmem:[#allocation2 + $0x10] sm:$0xff]
    %v53 = vld [vmem:[#allocation2 + $0x18] sm:$0xff]
    %v54 = vld [vmem:[#allocation2 + $0x20] sm:$0xff]
    %v55 = vld [vmem:[#allocation2 + $0x28] sm:$0xff]
    %v56 = vld [vmem:[#allocation2 + $0x30] sm:$0xff]
    %v57 = vld [vmem:[#allocation2 + $0x38] sm:$0xff]
    %v58 = vld [vmem:[#allocation2 + $0x40] sm:$0xff]
    %v59 = vld [vmem:[#allocation2 + $0x48] sm:$0xff]
    %v60 = vld [vmem:[#allocation2 + $0x50] sm:$0xff]
    %v61 = vld [vmem:[#allocation2 + $0x58] sm:$0xff]
    %v62 = vld [vmem:[#allocation2 + $0x60] sm:$0xff]
    %v63 = vld [vmem:[#allocation2 + $0x68] sm:$0xff]
    %v64 = vld [vmem:[#allocation2 + $0x70] sm:$0xff]
    %v65 = vld [vmem:[#allocation2 + $0x78] sm:$0xff]
    %v66 = vld [vmem:[#allocation2 + $0x80] sm:$0xff]
    %v67 = vld [vmem:[#allocation2 + $0x88] sm:$0xff]
    %v68 = vld [vmem:[#allocation2 + $0x90] sm:$0xff]
    %v69 = vld [vmem:[#allocation2 + $0x98] sm:$0xff]
    %v70 = vld [vmem:[#allocation2 + $0xa0] sm:$0xff]
    %v71 = vld [vmem:[#allocation2 + $0xa8] sm:$0xff]
    %v72 = vld [vmem:[#allocation2 + $0xb0] sm:$0xff]
    %v73 = vld [vmem:[#allocation2 + $0xb8] sm:$0xff]
    %v74 = vld [vmem:[#allocation2 + $0xc0] sm:$0xff]
    %v75 = vld [vmem:[#allocation2 + $0xc8] sm:$0xff]
    %v76 = vld [vmem:[#allocation2 + $0xd0] sm:$0xff]
    %v77 = vld [vmem:[#allocation2 + $0xd8] sm:$0xff]
    %v78 = vld [vmem:[#allocation2 + $0xe0] sm:$0xff]
    %v79 = vld [vmem:[#allocation2 + $0xe8] sm:$0xff]
    %v80 = vld [vmem:[#allocation2 + $0xf0] sm:$0xff]
    %v81 = vld [vmem:[#allocation2 + $0xf8] sm:$0xff]
    %v82 = vld [vmem:[#allocation2 + $0x100] sm:$0xff]
    %v83 = vld [vmem:[#allocation2 + $0x108] sm:$0xff]
    %v84 = vld [vmem:[#allocation2 + $0x110] sm:$0xff]
    %v85 = vld [vmem:[#allocation2 + $0x118] sm:$0xff]
    %v86 = vld [vmem:[#allocation2 + $0x120] sm:$0xff]
    %v87 = vld [vmem:[#allocation2 + $0x128] sm:$0xff]
    %v88 = vld [vmem:[#allocation2 + $0x130] sm:$0xff]
    %v89 = vld [vmem:[#allocation2 + $0x138] sm:$0xff]
    %v90 = vld [vmem:[#allocation2 + $0x140] sm:$0xff]
    %v91 = vld [vmem:[#allocation2 + $0x148] sm:$0xff]
    %v92 = vld [vmem:[#allocation2 + $0x150] sm:$0xff]
    %v93 = vld [vmem:[#allocation2 + $0x158] sm:$0xff]
    %v94 = vld [vmem:[#allocation2 + $0x160] sm:$0xff]
    %v95 = vld [vmem:[#allocation2 + $0x168] sm:$0xff]
    %v96 = vld [vmem:[#allocation2 + $0x170] sm:$0xff]
    %v97 = vld [vmem:[#allocation2 + $0x178] sm:$0xff]
    %v98 = vld [vmem:[#allocation2 + $0x180] sm:$0xff]
    %v99 = vld [vmem:[#allocation2 + $0x188] sm:$0xff]
    %v100 = vld [vmem:[#allocation2 + $0x190] sm:$0xff]
    %v101 = vld [vmem:[#allocation2 + $0x198] sm:$0xff]
    %v102 = vld [vmem:[#allocation2 + $0x1a0] sm:$0xff]
    %v103 = vld [vmem:[#allocation2 + $0x1a8] sm:$0xff]
    %v104 = vld [vmem:[#allocation2 + $0x1b0] sm:$0xff]
    %v105 = vld [vmem:[#allocation2 + $0x1b8] sm:$0xff]
    %v106 = vld [vmem:[#allocation2 + $0x1c0] sm:$0xff]
    %v107 = vld [vmem:[#allocation2 + $0x1c8] sm:$0xff]
    %v108 = vld [vmem:[#allocation2 + $0x1d0] sm:$0xff]
    %v109 = vld [vmem:[#allocation2 + $0x1d8] sm:$0xff]
    %v110 = vld [vmem:[#allocation2 + $0x1e0] sm:$0xff]
    %v111 = vld [vmem:[#allocation2 + $0x1e8] sm:$0xff]
    %v112 = vld [vmem:[#allocation2 + $0x1f0] sm:$0xff]
    %v113 = vld [vmem:[#allocation2 + $0x1f8] sm:$0xff]
    %v114 = vld [vmem:[#allocation2 + $0x200] sm:$0xff]
    %v115 = vld [vmem:[#allocation2 + $0x208] sm:$0xff]
    %v116 = vld [vmem:[#allocation2 + $0x210] sm:$0xff]
    %v117 = vld [vmem:[#allocation2 + $0x218] sm:$0xff]
    %v118 = vld [vmem:[#allocation2 + $0x220] sm:$0xff]
    %v119 = vld [vmem:[#allocation2 + $0x228] sm:$0xff]
    %v120 = vld [vmem:[#allocation2 + $0x230] sm:$0xff]
    %v121 = vld [vmem:[#allocation2 + $0x238] sm:$0xff]
    %v122 = vld [vmem:[#allocation2 + $0x240] sm:$0xff]
    %v123 = vld [vmem:[#allocation2 + $0x248] sm:$0xff]
    %v124 = vld [vmem:[#allocation2 + $0x250] sm:$0xff]
    %v125 = vld [vmem:[#allocation2 + $0x258] sm:$0xff]
    %v126 = vld [vmem:[#allocation2 + $0x260] sm:$0xff]
    %v127 = vld [vmem:[#allocation2 + $0x268] sm:$0xff]
    %v128 = vld [vmem:[#allocation2 + $0x270] sm:$0xff]
    %v129 = vld [vmem:[#allocation2 + $0x278] sm:$0xff]
    %v130 = vld [vmem:[#allocation2 + $0x280] sm:$0xff]
    %v131 = vld [vmem:[#allocation2 + $0x288] sm:$0xff]
    %v132 = vld [vmem:[#allocation2 + $0x290] sm:$0xff]
    %v133 = vld [vmem:[#allocation2 + $0x298] sm:$0xff]
    %v134 = vld [vmem:[#allocation2 + $0x2a0] sm:$0xff]
    %v135 = vld [vmem:[#allocation2 + $0x2a8] sm:$0xff]
    %v136 = vld [vmem:[#allocation2 + $0x2b0] sm:$0xff]
    %v137 = vld [vmem:[#allocation2 + $0x2b8] sm:$0xff]
    %v138 = vld [vmem:[#allocation2 + $0x2c0] sm:$0xff]
    %v139 = vld [vmem:[#allocation2 + $0x2c8] sm:$0xff]
    %v140 = vld [vmem:[#allocation2 + $0x2d0] sm:$0xff]
    %v141 = vld [vmem:[#allocation2 + $0x2d8] sm:$0xff]
    %v142 = vld [vmem:[#allocation2 + $0x2e0] sm:$0xff]
    %v143 = vld [vmem:[#allocation2 + $0x2e8] sm:$0xff]
    %v144 = vld [vmem:[#allocation2 + $0x2f0] sm:$0xff]
    %v145 = vld [vmem:[#allocation2 + $0x2f8] sm:$0xff]
    %v146 = vld [vmem:[#allocation2 + $0x300] sm:$0xff]
    %v147 = vld [vmem:[#allocation2 + $0x308] sm:$0xff]
    %v148 = vld [vmem:[#allocation2 + $0x310] sm:$0xff]
    %v149 = vld [vmem:[#allocation2 + $0x318] sm:$0xff]
    %v150 = vld [vmem:[#allocation2 + $0x320] sm:$0xff]
    %v151 = vld [vmem:[#allocation2 + $0x328] sm:$0xff]
    %v152 = vld [vmem:[#allocation2 + $0x330] sm:$0xff]
    %v153 = vld [vmem:[#allocation2 + $0x338] sm:$0xff]
    %v154 = vld [vmem:[#allocation2 + $0x340] sm:$0xff]
    %v155 = vld [vmem:[#allocation2 + $0x348] sm:$0xff]
    %v156 = vld [vmem:[#allocation2 + $0x350] sm:$0xff]
    %v157 = vld [vmem:[#allocation2 + $0x358] sm:$0xff]
    %v158 = vld [vmem:[#allocation2 + $0x360] sm:$0xff]
    %v159 = vld [vmem:[#allocation2 + $0x368] sm:$0xff]
    %v160 = vld [vmem:[#allocation2 + $0x370] sm:$0xff]
    %v161 = vld [vmem:[#allocation2 + $0x378] sm:$0xff]
    %v162 = vld [vmem:[#allocation2 + $0x380] sm:$0xff]
    %v163 = vld [vmem:[#allocation2 + $0x388] sm:$0xff]
    %v164 = vld [vmem:[#allocation2 + $0x390] sm:$0xff]
    %v165 = vld [vmem:[#allocation2 + $0x398] sm:$0xff]
    %v166 = vld [vmem:[#allocation2 + $0x3a0] sm:$0xff]
    %v167 = vld [vmem:[#allocation2 + $0x3a8] sm:$0xff]
    %v168 = vld [vmem:[#allocation2 + $0x3b0] sm:$0xff]
    %v169 = vld [vmem:[#allocation2 + $0x3b8] sm:$0xff]
    %v170 = vld [vmem:[#allocation2 + $0x3c0] sm:$0xff]
    %v171 = vld [vmem:[#allocation2 + $0x3c8] sm:$0xff]
    %v172 = vld [vmem:[#allocation2 + $0x3d0] sm:$0xff]
    %v173 = vld [vmem:[#allocation2 + $0x3d8] sm:$0xff]
    %v174 = vld [vmem:[#allocation2 + $0x3e0] sm:$0xff]
    %v175 = vld [vmem:[#allocation2 + $0x3e8] sm:$0xff]
    %v176 = vld [vmem:[#allocation2 + $0x3f0] sm:$0xff]
    %v177 = vld [vmem:[#allocation2 + $0x3f8] sm:$0xff]
    %v178 = vld [vmem:[%s5] sm:$0x1]
    %v179 = vld [vmem:[%s6] sm:$0xff]
    %v180 = vld [vmem:[%s6 + $0x8] sm:$0xff]
    %v181 = vld [vmem:[%s6 + $0x10] sm:$0xff]
    %v182 = vld [vmem:[%s6 + $0x18] sm:$0xff]
    %v183 = vld [vmem:[%s6 + $0x20] sm:$0xff]
    %v184 = vld [vmem:[%s6 + $0x28] sm:$0xff]
    %v185 = vld [vmem:[%s6 + $0x30] sm:$0xff]
    %v186 = vld [vmem:[%s6 + $0x38] sm:$0xff]
    %v187 = vld [vmem:[%s6 + $0x40] sm:$0xff]
    %v188 = vld [vmem:[%s6 + $0x48] sm:$0xff]
    %v189 = vld [vmem:[%s6 + $0x50] sm:$0xff]
    %v190 = vld [vmem:[%s6 + $0x58] sm:$0xff]
    %v191 = vld [vmem:[%s6 + $0x60] sm:$0xff]
    %v192 = vld [vmem:[%s6 + $0x68] sm:$0xff]
    %v193 = vld [vmem:[%s6 + $0x70] sm:$0xff]
    %v194 = vld [vmem:[%s6 + $0x78] sm:$0xff]
    %v195 = vld [vmem:[%s7] sm:$0x1]
    %v196 = vld [vmem:[%s0] sm:$0xff]
    %v197 = vld [vmem:[%s0 + $0x8] sm:$0xff]
    %v199 = vlaneseq
    %v200 = vshrl.u32 %v199, 7
    %v201 = vsub.s32 0, %v200
    %v202 = vrot.slane %v178, %v201
    %v206 = vcombine.high %v196, %v196
    %v208 = vunpack.c.l.s4 1983009808
    %v209 = vunpack.c.0.s8 %v208
    %v210 = vlaneseq
    %v211 = vshrl.u32 %v210, 7
    %v212 = vsub.s32 %v209, %v211
    %v213 = vrot.slane %v196, %v212
    %v215 = vunpack.c.l.s4 1983009808
    %v216 = vunpack.c.0.s8 %v215
    %v217 = vlaneseq
    %v218 = vshrl.u32 %v217, 7
    %v219 = vsub.s32 %v216, %v218
    %v220 = vrot.slane %v206, %v219
    %v221 = vcombine.high %v213, %v213
    %v222 = vcombine.high %v220, %v220
    %v223 = vcombine.high %v197, %v197
    %v225 = vunpack.c.l.s4 1983009808
    %v226 = vunpack.c.0.s8 %v225
    %v227 = vlaneseq
    %v228 = vshrl.u32 %v227, 7
    %v229 = vsub.s32 %v226, %v228
    %v230 = vrot.slane %v197, %v229
    %v232 = vunpack.c.l.s4 1983009808
    %v233 = vunpack.c.0.s8 %v232
    %v234 = vlaneseq
    %v235 = vshrl.u32 %v234, 7
    %v236 = vsub.s32 %v233, %v235
    %v237 = vrot.slane %v223, %v236
    %v238 = vcombine.high %v230, %v230
    %v239 = vcombine.high %v237, %v237
    %248 = vmatprep.subr.mxu0 0.0
    %249 = vmatpush1.msra.mxu0 %v50
    %250 = vmatprep.subr.mxu0 0.0
    %251 = vmatpush1.msra.mxu0 %v51
    %252 = vmatprep.subr.mxu0 0.0
    %253 = vmatpush1.msra.mxu0 %v52
    %254 = vmatprep.subr.mxu0 0.0
    %255 = vmatpush1.msra.mxu0 %v53
    %256 = vmatprep.subr.mxu0 0.0
    %257 = vmatpush1.msra.mxu0 %v54
    %258 = vmatprep.subr.mxu0 0.0
    %259 = vmatpush1.msra.mxu0 %v55
    %260 = vmatprep.subr.mxu0 0.0
    %261 = vmatpush1.msra.mxu0 %v56
    %262 = vmatprep.subr.mxu0 0.0
    %263 = vmatpush1.msra.mxu0 %v57
    %264 = vmatprep.subr.mxu0 0.0
    %265 = vmatpush1.msra.mxu0 %v58
    %266 = vmatprep.subr.mxu0 0.0
    %267 = vmatpush1.msra.mxu0 %v59
    %268 = vmatprep.subr.mxu0 0.0
    %269 = vmatpush1.msra.mxu0 %v60
    %270 = vmatprep.subr.mxu0 0.0
    %271 = vmatpush1.msra.mxu0 %v61
    %272 = vmatprep.subr.mxu0 0.0
    %273 = vmatpush1.msra.mxu0 %v62
    %274 = vmatprep.subr.mxu0 0.0
    %275 = vmatpush1.msra.mxu0 %v63
    %276 = vmatprep.subr.mxu0 0.0
    %277 = vmatpush1.msra.mxu0 %v64
    %278 = vmatprep.subr.mxu0 0.0
    %279 = vmatpush1.msra.mxu0 %v65
    %280 = vmatprep.subr.mxu0 0.0
    %281 = vmatpush1.msra.mxu0 %v66
    %282 = vmatprep.subr.mxu0 0.0
    %283 = vmatpush1.msra.mxu0 %v67
    %284 = vmatprep.subr.mxu0 0.0
    %285 = vmatpush1.msra.mxu0 %v68
    %286 = vmatprep.subr.mxu0 0.0
    %287 = vmatpush1.msra.mxu0 %v69
    %288 = vmatprep.subr.mxu0 0.0
    %289 = vmatpush1.msra.mxu0 %v70
    %290 = vmatprep.subr.mxu0 0.0
    %291 = vmatpush1.msra.mxu0 %v71
    %292 = vmatprep.subr.mxu0 0.0
    %293 = vmatpush1.msra.mxu0 %v72
    %294 = vmatprep.subr.mxu0 0.0
    %295 = vmatpush1.msra.mxu0 %v73
    %296 = vmatprep.subr.mxu0 0.0
    %297 = vmatpush1.msra.mxu0 %v74
    %298 = vmatprep.subr.mxu0 0.0
    %299 = vmatpush1.msra.mxu0 %v75
    %300 = vmatprep.subr.mxu0 0.0
    %301 = vmatpush1.msra.mxu0 %v76
    %302 = vmatprep.subr.mxu0 0.0
    %303 = vmatpush1.msra.mxu0 %v77
    %304 = vmatprep.subr.mxu0 0.0
    %305 = vmatpush1.msra.mxu0 %v78
    %306 = vmatprep.subr.mxu0 0.0
    %307 = vmatpush1.msra.mxu0 %v79
    %308 = vmatprep.subr.mxu0 0.0
    %309 = vmatpush1.msra.mxu0 %v80
    %310 = vmatprep.subr.mxu0 0.0
    %311 = vmatpush1.msra.mxu0 %v81
    %312 = vmatprep.mubr.f32.mxu0 %v221
    %313 = vmatmul.mubr.f32.gmra.mrb[0].mxu0 %v213
    %v314 = vpop.f32.mrb[0].mxu0
    %v315 = vadd.f32 %v202, %v314
    %v316 = vpop.f32.mrb[0].mxu0
    %317 = vdwg.mxu0
    %318 = vmatprep.subr.mxu0 0.0
    %319 = vmatpush1.msra.mxu0 %v82
    %320 = vmatprep.subr.mxu0 0.0
    %321 = vmatpush1.msra.mxu0 %v83
    %322 = vmatprep.subr.mxu0 0.0
    %323 = vmatpush1.msra.mxu0 %v84
    %324 = vmatprep.subr.mxu0 0.0
    %325 = vmatpush1.msra.mxu0 %v85
    %326 = vmatprep.subr.mxu0 0.0
    %327 = vmatpush1.msra.mxu0 %v86
    %328 = vmatprep.subr.mxu0 0.0
    %329 = vmatpush1.msra.mxu0 %v87
    %330 = vmatprep.subr.mxu0 0.0
    %331 = vmatpush1.msra.mxu0 %v88
    %332 = vmatprep.subr.mxu0 0.0
    %333 = vmatpush1.msra.mxu0 %v89
    %334 = vmatprep.subr.mxu0 0.0
    %335 = vmatpush1.msra.mxu0 %v90
    %336 = vmatprep.subr.mxu0 0.0
    %337 = vmatpush1.msra.mxu0 %v91
    %338 = vmatprep.subr.mxu0 0.0
    %339 = vmatpush1.msra.mxu0 %v92
    %340 = vmatprep.subr.mxu0 0.0
    %341 = vmatpush1.msra.mxu0 %v93
    %342 = vmatprep.subr.mxu0 0.0
    %343 = vmatpush1.msra.mxu0 %v94
    %344 = vmatprep.subr.mxu0 0.0
    %345 = vmatpush1.msra.mxu0 %v95
    %346 = vmatprep.subr.mxu0 0.0
    %347 = vmatpush1.msra.mxu0 %v96
    %348 = vmatprep.subr.mxu0 0.0
    %349 = vmatpush1.msra.mxu0 %v97
    %350 = vmatprep.subr.mxu0 0.0
    %351 = vmatpush1.msra.mxu0 %v98
    %352 = vmatprep.subr.mxu0 0.0
    %353 = vmatpush1.msra.mxu0 %v99
    %354 = vmatprep.subr.mxu0 0.0
    %355 = vmatpush1.msra.mxu0 %v100
    %356 = vmatprep.subr.mxu0 0.0
    %357 = vmatpush1.msra.mxu0 %v101
    %358 = vmatprep.subr.mxu0 0.0
    %359 = vmatpush1.msra.mxu0 %v102
    %360 = vmatprep.subr.mxu0 0.0
    %361 = vmatpush1.msra.mxu0 %v103
    %362 = vmatprep.subr.mxu0 0.0
    %363 = vmatpush1.msra.mxu0 %v104
    %364 = vmatprep.subr.mxu0 0.0
    %365 = vmatpush1.msra.mxu0 %v105
    %366 = vmatprep.subr.mxu0 0.0
    %367 = vmatpush1.msra.mxu0 %v106
    %368 = vmatprep.subr.mxu0 0.0
    %369 = vmatpush1.msra.mxu0 %v107
    %370 = vmatprep.subr.mxu0 0.0
    %371 = vmatpush1.msra.mxu0 %v108
    %372 = vmatprep.subr.mxu0 0.0
    %373 = vmatpush1.msra.mxu0 %v109
    %374 = vmatprep.subr.mxu0 0.0
    %375 = vmatpush1.msra.mxu0 %v110
    %376 = vmatprep.subr.mxu0 0.0
    %377 = vmatpush1.msra.mxu0 %v111
    %378 = vmatprep.subr.mxu0 0.0
    %379 = vmatpush1.msra.mxu0 %v112
    %380 = vmatprep.subr.mxu0 0.0
    %381 = vmatpush1.msra.mxu0 %v113
    %382 = vmatprep.mubr.f32.mxu0 %v222
    %383 = vmatmul.mubr.f32.gmra.mrb[0].mxu0 %v220
    %v384 = vpop.f32.mrb[0].mxu0
    %v385 = vadd.f32 %v315, %v384
    %v386 = vpop.f32.mrb[0].mxu0
    %387 = vdwg.mxu0
    %388 = vmatprep.subr.mxu0 0.0
    %389 = vmatpush1.msra.mxu0 %v114
    %390 = vmatprep.subr.mxu0 0.0
    %391 = vmatpush1.msra.mxu0 %v115
    %392 = vmatprep.subr.mxu0 0.0
    %393 = vmatpush1.msra.mxu0 %v116
    %394 = vmatprep.subr.mxu0 0.0
    %395 = vmatpush1.msra.mxu0 %v117
    %396 = vmatprep.subr.mxu0 0.0
    %397 = vmatpush1.msra.mxu0 %v118
    %398 = vmatprep.subr.mxu0 0.0
    %399 = vmatpush1.msra.mxu0 %v119
    %400 = vmatprep.subr.mxu0 0.0
    %401 = vmatpush1.msra.mxu0 %v120
    %402 = vmatprep.subr.mxu0 0.0
    %403 = vmatpush1.msra.mxu0 %v121
    %404 = vmatprep.subr.mxu0 0.0
    %405 = vmatpush1.msra.mxu0 %v122
    %406 = vmatprep.subr.mxu0 0.0
    %407 = vmatpush1.msra.mxu0 %v123
    %408 = vmatprep.subr.mxu0 0.0
    %409 = vmatpush1.msra.mxu0 %v124
    %410 = vmatprep.subr.mxu0 0.0
    %411 = vmatpush1.msra.mxu0 %v125
    %412 = vmatprep.subr.mxu0 0.0
    %413 = vmatpush1.msra.mxu0 %v126
    %414 = vmatprep.subr.mxu0 0.0
    %415 = vmatpush1.msra.mxu0 %v127
    %416 = vmatprep.subr.mxu0 0.0
    %417 = vmatpush1.msra.mxu0 %v128
    %418 = vmatprep.subr.mxu0 0.0
    %419 = vmatpush1.msra.mxu0 %v129
    %420 = vmatprep.subr.mxu0 0.0
    %421 = vmatpush1.msra.mxu0 %v130
    %422 = vmatprep.subr.mxu0 0.0
    %423 = vmatpush1.msra.mxu0 %v131
    %424 = vmatprep.subr.mxu0 0.0
    %425 = vmatpush1.msra.mxu0 %v132
    %426 = vmatprep.subr.mxu0 0.0
    %427 = vmatpush1.msra.mxu0 %v133
    %428 = vmatprep.subr.mxu0 0.0
    %429 = vmatpush1.msra.mxu0 %v134
    %430 = vmatprep.subr.mxu0 0.0
    %431 = vmatpush1.msra.mxu0 %v135
    %432 = vmatprep.subr.mxu0 0.0
    %433 = vmatpush1.msra.mxu0 %v136
    %434 = vmatprep.subr.mxu0 0.0
    %435 = vmatpush1.msra.mxu0 %v137
    %436 = vmatprep.subr.mxu0 0.0
    %437 = vmatpush1.msra.mxu0 %v138
    %438 = vmatprep.subr.mxu0 0.0
    %439 = vmatpush1.msra.mxu0 %v139
    %440 = vmatprep.subr.mxu0 0.0
    %441 = vmatpush1.msra.mxu0 %v140
    %442 = vmatprep.subr.mxu0 0.0
    %443 = vmatpush1.msra.mxu0 %v141
    %444 = vmatprep.subr.mxu0 0.0
    %445 = vmatpush1.msra.mxu0 %v142
    %446 = vmatprep.subr.mxu0 0.0
    %447 = vmatpush1.msra.mxu0 %v143
    %448 = vmatprep.subr.mxu0 0.0
    %449 = vmatpush1.msra.mxu0 %v144
    %450 = vmatprep.subr.mxu0 0.0
    %451 = vmatpush1.msra.mxu0 %v145
    %452 = vmatprep.mubr.f32.mxu0 %v238
    %453 = vmatmul.mubr.f32.gmra.mrb[0].mxu0 %v230
    %v454 = vpop.f32.mrb[0].mxu0
    %v455 = vadd.f32 %v385, %v454
    %v456 = vpop.f32.mrb[0].mxu0
    %457 = vdwg.mxu0
    %458 = vmatprep.subr.mxu0 0.0
    %459 = vmatpush1.msra.mxu0 %v146
    %460 = vmatprep.subr.mxu0 0.0
    %461 = vmatpush1.msra.mxu0 %v147
    %462 = vmatprep.subr.mxu0 0.0
    %463 = vmatpush1.msra.mxu0 %v148
    %464 = vmatprep.subr.mxu0 0.0
    %465 = vmatpush1.msra.mxu0 %v149
    %466 = vmatprep.subr.mxu0 0.0
    %467 = vmatpush1.msra.mxu0 %v150
    %468 = vmatprep.subr.mxu0 0.0
    %469 = vmatpush1.msra.mxu0 %v151
    %470 = vmatprep.subr.mxu0 0.0
    %471 = vmatpush1.msra.mxu0 %v152
    %472 = vmatprep.subr.mxu0 0.0
    %473 = vmatpush1.msra.mxu0 %v153
    %474 = vmatprep.subr.mxu0 0.0
    %475 = vmatpush1.msra.mxu0 %v154
    %476 = vmatprep.subr.mxu0 0.0
    %477 = vmatpush1.msra.mxu0 %v155
    %478 = vmatprep.subr.mxu0 0.0
    %479 = vmatpush1.msra.mxu0 %v156
    %480 = vmatprep.subr.mxu0 0.0
    %481 = vmatpush1.msra.mxu0 %v157
    %482 = vmatprep.subr.mxu0 0.0
    %483 = vmatpush1.msra.mxu0 %v158
    %484 = vmatprep.subr.mxu0 0.0
    %485 = vmatpush1.msra.mxu0 %v159
    %486 = vmatprep.subr.mxu0 0.0
    %487 = vmatpush1.msra.mxu0 %v160
    %488 = vmatprep.subr.mxu0 0.0
    %489 = vmatpush1.msra.mxu0 %v161
    %490 = vmatprep.subr.mxu0 0.0
    %491 = vmatpush1.msra.mxu0 %v162
    %492 = vmatprep.subr.mxu0 0.0
    %493 = vmatpush1.msra.mxu0 %v163
    %494 = vmatprep.subr.mxu0 0.0
    %495 = vmatpush1.msra.mxu0 %v164
    %496 = vmatprep.subr.mxu0 0.0
    %497 = vmatpush1.msra.mxu0 %v165
    %498 = vmatprep.subr.mxu0 0.0
    %499 = vmatpush1.msra.mxu0 %v166
    %500 = vmatprep.subr.mxu0 0.0
    %501 = vmatpush1.msra.mxu0 %v167
    %502 = vmatprep.subr.mxu0 0.0
    %503 = vmatpush1.msra.mxu0 %v168
    %504 = vmatprep.subr.mxu0 0.0
    %505 = vmatpush1.msra.mxu0 %v169
    %506 = vmatprep.subr.mxu0 0.0
    %507 = vmatpush1.msra.mxu0 %v170
    %508 = vmatprep.subr.mxu0 0.0
    %509 = vmatpush1.msra.mxu0 %v171
    %510 = vmatprep.subr.mxu0 0.0
    %511 = vmatpush1.msra.mxu0 %v172
    %512 = vmatprep.subr.mxu0 0.0
    %513 = vmatpush1.msra.mxu0 %v173
    %514 = vmatprep.subr.mxu0 0.0
    %515 = vmatpush1.msra.mxu0 %v174
    %516 = vmatprep.subr.mxu0 0.0
    %517 = vmatpush1.msra.mxu0 %v175
    %518 = vmatprep.subr.mxu0 0.0
    %519 = vmatpush1.msra.mxu0 %v176
    %520 = vmatprep.subr.mxu0 0.0
    %521 = vmatpush1.msra.mxu0 %v177
    %522 = vmatprep.mubr.f32.mxu0 %v239
    %523 = vmatmul.mubr.f32.gmra.mrb[0].mxu0 %v237
    %v524 = vpop.f32.mrb[0].mxu0
    %v525 = vadd.f32 %v455, %v524
    %v526 = vpop.f32.mrb[0].mxu0
    %527 = vdwg.mxu0
    %v528 = vmax.f32 %v525, 0.0
    %v530 = vlaneseq
    %v531 = vshrl.u32 %v530, 7
    %v532 = vsub.s32 0, %v531
    %v533 = vrot.slane %v195, %v532
    %535 = vmatprep.subr.mxu0 0.0
    %536 = vmatpush1.msra.mxu0 %v179
    %537 = vmatprep.subr.mxu0 0.0
    %538 = vmatpush1.msra.mxu0 %v180
    %539 = vmatprep.subr.mxu0 0.0
    %540 = vmatpush1.msra.mxu0 %v181
    %541 = vmatprep.subr.mxu0 0.0
    %542 = vmatpush1.msra.mxu0 %v182
    %543 = vmatprep.subr.mxu0 0.0
    %544 = vmatpush1.msra.mxu0 %v183
    %545 = vmatprep.subr.mxu0 0.0
    %546 = vmatpush1.msra.mxu0 %v184
    %547 = vmatprep.subr.mxu0 0.0
    %548 = vmatpush1.msra.mxu0 %v185
    %549 = vmatprep.subr.mxu0 0.0
    %550 = vmatpush1.msra.mxu0 %v186
    %551 = vmatprep.subr.mxu0 0.0
    %552 = vmatpush1.msra.mxu0 %v187
    %553 = vmatprep.subr.mxu0 0.0
    %554 = vmatpush1.msra.mxu0 %v188
    %555 = vmatprep.subr.mxu0 0.0
    %556 = vmatpush1.msra.mxu0 %v189
    %557 = vmatprep.subr.mxu0 0.0
    %558 = vmatpush1.msra.mxu0 %v190
    %559 = vmatprep.subr.mxu0 0.0
    %560 = vmatpush1.msra.mxu0 %v191
    %561 = vmatprep.subr.mxu0 0.0
    %562 = vmatpush1.msra.mxu0 %v192
    %563 = vmatprep.subr.mxu0 0.0
    %564 = vmatpush1.msra.mxu0 %v193
    %565 = vmatprep.subr.mxu0 0.0
    %566 = vmatpush1.msra.mxu0 %v194
    %567 = vmatprep.subr.mxu0 0.0
    %568 = vmatpush1.msra.mxu0 0.0
    %569 = vmatprep.subr.mxu0 0.0
    %570 = vmatpush1.msra.mxu0 0.0
    %571 = vmatprep.subr.mxu0 0.0
    %572 = vmatpush1.msra.mxu0 0.0
    %573 = vmatprep.subr.mxu0 0.0
    %574 = vmatpush1.msra.mxu0 0.0
    %575 = vmatprep.subr.mxu0 0.0
    %576 = vmatpush1.msra.mxu0 0.0
    %577 = vmatprep.subr.mxu0 0.0
    %578 = vmatpush1.msra.mxu0 0.0
    %579 = vmatprep.subr.mxu0 0.0
    %580 = vmatpush1.msra.mxu0 0.0
    %581 = vmatprep.subr.mxu0 0.0
    %582 = vmatpush1.msra.mxu0 0.0
    %583 = vmatprep.subr.mxu0 0.0
    %584 = vmatpush1.msra.mxu0 0.0
    %585 = vmatprep.subr.mxu0 0.0
    %586 = vmatpush1.msra.mxu0 0.0
    %587 = vmatprep.subr.mxu0 0.0
    %588 = vmatpush1.msra.mxu0 0.0
    %589 = vmatprep.subr.mxu0 0.0
    %590 = vmatpush1.msra.mxu0 0.0
    %591 = vmatprep.subr.mxu0 0.0
    %592 = vmatpush1.msra.mxu0 0.0
    %593 = vmatprep.subr.mxu0 0.0
    %594 = vmatpush1.msra.mxu0 0.0
    %595 = vmatprep.subr.mxu0 0.0
    %596 = vmatpush1.msra.mxu0 0.0
    %597 = vmatprep.subr.mxu0 0.0
    %598 = vmatpush1.msra.mxu0 0.0
    %599 = vmatprep.mubr.f32.mxu0 0.0
    %600 = vmatmul.mubr.f32.gmra.mrb[0].mxu0 %v528
    %v601 = vpop.f32.mrb[0].mxu0
    %v602 = vadd.f32 %v533, %v601
    %v603 = vpop.f32.mrb[0].mxu0
    %604 = vdwg.mxu0
    %605 = vst [vmem:[#allocation5] sm:$0x3] %v602
    %v606 = vld [vmem:[%s1] sm:$0xff]
    %v607 = vld [vmem:[%s1 + $0x8] sm:$0xff]
    %v610 = vcombine.high %v606, %v606
    %v612 = vunpack.c.l.s4 1983009808
    %v613 = vunpack.c.0.s8 %v612
    %v614 = vlaneseq
    %v615 = vshrl.u32 %v614, 7
    %v616 = vsub.s32 %v613, %v615
    %v617 = vrot.slane %v606, %v616
    %v619 = vunpack.c.l.s4 1983009808
    %v620 = vunpack.c.0.s8 %v619
    %v621 = vlaneseq
    %v622 = vshrl.u32 %v621, 7
    %v623 = vsub.s32 %v620, %v622
    %v624 = vrot.slane %v610, %v623
    %v625 = vcombine.high %v617, %v617
    %v626 = vcombine.high %v624, %v624
    %v627 = vcombine.high %v607, %v607
    %v629 = vunpack.c.l.s4 1983009808
    %v630 = vunpack.c.0.s8 %v629
    %v631 = vlaneseq
    %v632 = vshrl.u32 %v631, 7
    %v633 = vsub.s32 %v630, %v632
    %v634 = vrot.slane %v607, %v633
    %v636 = vunpack.c.l.s4 1983009808
    %v637 = vunpack.c.0.s8 %v636
    %v638 = vlaneseq
    %v639 = vshrl.u32 %v638, 7
    %v640 = vsub.s32 %v637, %v639
    %v641 = vrot.slane %v627, %v640
    %v642 = vcombine.high %v634, %v634
    %v643 = vcombine.high %v641, %v641
    %652 = vmatprep.subr.mxu0 0.0
    %653 = vmatpush1.msra.mxu0 %v50
    %654 = vmatprep.subr.mxu0 0.0
    %655 = vmatpush1.msra.mxu0 %v51
    %656 = vmatprep.subr.mxu0 0.0
    %657 = vmatpush1.msra.mxu0 %v52
    %658 = vmatprep.subr.mxu0 0.0
    %659 = vmatpush1.msra.mxu0 %v53
    %660 = vmatprep.subr.mxu0 0.0
    %661 = vmatpush1.msra.mxu0 %v54
    %662 = vmatprep.subr.mxu0 0.0
    %663 = vmatpush1.msra.mxu0 %v55
    %664 = vmatprep.subr.mxu0 0.0
    %665 = vmatpush1.msra.mxu0 %v56
    %666 = vmatprep.subr.mxu0 0.0
    %667 = vmatpush1.msra.mxu0 %v57
    %668 = vmatprep.subr.mxu0 0.0
    %669 = vmatpush1.msra.mxu0 %v58
    %670 = vmatprep.subr.mxu0 0.0
    %671 = vmatpush1.msra.mxu0 %v59
    %672 = vmatprep.subr.mxu0 0.0
    %673 = vmatpush1.msra.mxu0 %v60
    %674 = vmatprep.subr.mxu0 0.0
    %675 = vmatpush1.msra.mxu0 %v61
    %676 = vmatprep.subr.mxu0 0.0
    %677 = vmatpush1.msra.mxu0 %v62
    %678 = vmatprep.subr.mxu0 0.0
    %679 = vmatpush1.msra.mxu0 %v63
    %680 = vmatprep.subr.mxu0 0.0
    %681 = vmatpush1.msra.mxu0 %v64
    %682 = vmatprep.subr.mxu0 0.0
    %683 = vmatpush1.msra.mxu0 %v65
    %684 = vmatprep.subr.mxu0 0.0
    %685 = vmatpush1.msra.mxu0 %v66
    %686 = vmatprep.subr.mxu0 0.0
    %687 = vmatpush1.msra.mxu0 %v67
    %688 = vmatprep.subr.mxu0 0.0
    %689 = vmatpush1.msra.mxu0 %v68
    %690 = vmatprep.subr.mxu0 0.0
    %691 = vmatpush1.msra.mxu0 %v69
    %692 = vmatprep.subr.mxu0 0.0
    %693 = vmatpush1.msra.mxu0 %v70
    %694 = vmatprep.subr.mxu0 0.0
    %695 = vmatpush1.msra.mxu0 %v71
    %696 = vmatprep.subr.mxu0 0.0
    %697 = vmatpush1.msra.mxu0 %v72
    %698 = vmatprep.subr.mxu0 0.0
    %699 = vmatpush1.msra.mxu0 %v73
    %700 = vmatprep.subr.mxu0 0.0
    %701 = vmatpush1.msra.mxu0 %v74
    %702 = vmatprep.subr.mxu0 0.0
    %703 = vmatpush1.msra.mxu0 %v75
    %704 = vmatprep.subr.mxu0 0.0
    %705 = vmatpush1.msra.mxu0 %v76
    %706 = vmatprep.subr.mxu0 0.0
    %707 = vmatpush1.msra.mxu0 %v77
    %708 = vmatprep.subr.mxu0 0.0
    %709 = vmatpush1.msra.mxu0 %v78
    %710 = vmatprep.subr.mxu0 0.0
    %711 = vmatpush1.msra.mxu0 %v79
    %712 = vmatprep.subr.mxu0 0.0
    %713 = vmatpush1.msra.mxu0 %v80
    %714 = vmatprep.subr.mxu0 0.0
    %715 = vmatpush1.msra.mxu0 %v81
    %716 = vmatprep.mubr.f32.mxu0 %v625
    %717 = vmatmul.mubr.f32.gmra.mrb[0].mxu0 %v617
    %v718 = vpop.f32.mrb[0].mxu0
    %v719 = vadd.f32 %v202, %v718
    %v720 = vpop.f32.mrb[0].mxu0
    %721 = vdwg.mxu0
    %722 = vmatprep.subr.mxu0 0.0
    %723 = vmatpush1.msra.mxu0 %v82
    %724 = vmatprep.subr.mxu0 0.0
    %725 = vmatpush1.msra.mxu0 %v83
    %726 = vmatprep.subr.mxu0 0.0
    %727 = vmatpush1.msra.mxu0 %v84
    %728 = vmatprep.subr.mxu0 0.0
    %729 = vmatpush1.msra.mxu0 %v85
    %730 = vmatprep.subr.mxu0 0.0
    %731 = vmatpush1.msra.mxu0 %v86
    %732 = vmatprep.subr.mxu0 0.0
    %733 = vmatpush1.msra.mxu0 %v87
    %734 = vmatprep.subr.mxu0 0.0
    %735 = vmatpush1.msra.mxu0 %v88
    %736 = vmatprep.subr.mxu0 0.0
    %737 = vmatpush1.msra.mxu0 %v89
    %738 = vmatprep.subr.mxu0 0.0
    %739 = vmatpush1.msra.mxu0 %v90
    %740 = vmatprep.subr.mxu0 0.0
    %741 = vmatpush1.msra.mxu0 %v91
    %742 = vmatprep.subr.mxu0 0.0
    %743 = vmatpush1.msra.mxu0 %v92
    %744 = vmatprep.subr.mxu0 0.0
    %745 = vmatpush1.msra.mxu0 %v93
    %746 = vmatprep.subr.mxu0 0.0
    %747 = vmatpush1.msra.mxu0 %v94
    %748 = vmatprep.subr.mxu0 0.0
    %749 = vmatpush1.msra.mxu0 %v95
    %750 = vmatprep.subr.mxu0 0.0
    %751 = vmatpush1.msra.mxu0 %v96
    %752 = vmatprep.subr.mxu0 0.0
    %753 = vmatpush1.msra.mxu0 %v97
    %754 = vmatprep.subr.mxu0 0.0
    %755 = vmatpush1.msra.mxu0 %v98
    %756 = vmatprep.subr.mxu0 0.0
    %757 = vmatpush1.msra.mxu0 %v99
    %758 = vmatprep.subr.mxu0 0.0
    %759 = vmatpush1.msra.mxu0 %v100
    %760 = vmatprep.subr.mxu0 0.0
    %761 = vmatpush1.msra.mxu0 %v101
    %762 = vmatprep.subr.mxu0 0.0
    %763 = vmatpush1.msra.mxu0 %v102
    %764 = vmatprep.subr.mxu0 0.0
    %765 = vmatpush1.msra.mxu0 %v103
    %766 = vmatprep.subr.mxu0 0.0
    %767 = vmatpush1.msra.mxu0 %v104
    %768 = vmatprep.subr.mxu0 0.0
    %769 = vmatpush1.msra.mxu0 %v105
    %770 = vmatprep.subr.mxu0 0.0
    %771 = vmatpush1.msra.mxu0 %v106
    %772 = vmatprep.subr.mxu0 0.0
    %773 = vmatpush1.msra.mxu0 %v107
    %774 = vmatprep.subr.mxu0 0.0
    %775 = vmatpush1.msra.mxu0 %v108
    %776 = vmatprep.subr.mxu0 0.0
    %777 = vmatpush1.msra.mxu0 %v109
    %778 = vmatprep.subr.mxu0 0.0
    %779 = vmatpush1.msra.mxu0 %v110
    %780 = vmatprep.subr.mxu0 0.0
    %781 = vmatpush1.msra.mxu0 %v111
    %782 = vmatprep.subr.mxu0 0.0
    %783 = vmatpush1.msra.mxu0 %v112
    %784 = vmatprep.subr.mxu0 0.0
    %785 = vmatpush1.msra.mxu0 %v113
    %786 = vmatprep.mubr.f32.mxu0 %v626
    %787 = vmatmul.mubr.f32.gmra.mrb[0].mxu0 %v624
    %v788 = vpop.f32.mrb[0].mxu0
    %v789 = vadd.f32 %v719, %v788
    %v790 = vpop.f32.mrb[0].mxu0
    %791 = vdwg.mxu0
    %792 = vmatprep.subr.mxu0 0.0
    %793 = vmatpush1.msra.mxu0 %v114
    %794 = vmatprep.subr.mxu0 0.0
    %795 = vmatpush1.msra.mxu0 %v115
    %796 = vmatprep.subr.mxu0 0.0
    %797 = vmatpush1.msra.mxu0 %v116
    %798 = vmatprep.subr.mxu0 0.0
    %799 = vmatpush1.msra.mxu0 %v117
    %800 = vmatprep.subr.mxu0 0.0
    %801 = vmatpush1.msra.mxu0 %v118
    %802 = vmatprep.subr.mxu0 0.0
    %803 = vmatpush1.msra.mxu0 %v119
    %804 = vmatprep.subr.mxu0 0.0
    %805 = vmatpush1.msra.mxu0 %v120
    %806 = vmatprep.subr.mxu0 0.0
    %807 = vmatpush1.msra.mxu0 %v121
    %808 = vmatprep.subr.mxu0 0.0
    %809 = vmatpush1.msra.mxu0 %v122
    %810 = vmatprep.subr.mxu0 0.0
    %811 = vmatpush1.msra.mxu0 %v123
    %812 = vmatprep.subr.mxu0 0.0
    %813 = vmatpush1.msra.mxu0 %v124
    %814 = vmatprep.subr.mxu0 0.0
    %815 = vmatpush1.msra.mxu0 %v125
    %816 = vmatprep.subr.mxu0 0.0
    %817 = vmatpush1.msra.mxu0 %v126
    %818 = vmatprep.subr.mxu0 0.0
    %819 = vmatpush1.msra.mxu0 %v127
    %820 = vmatprep.subr.mxu0 0.0
    %821 = vmatpush1.msra.mxu0 %v128
    %822 = vmatprep.subr.mxu0 0.0
    %823 = vmatpush1.msra.mxu0 %v129
    %824 = vmatprep.subr.mxu0 0.0
    %825 = vmatpush1.msra.mxu0 %v130
    %826 = vmatprep.subr.mxu0 0.0
    %827 = vmatpush1.msra.mxu0 %v131
    %828 = vmatprep.subr.mxu0 0.0
    %829 = vmatpush1.msra.mxu0 %v132
    %830 = vmatprep.subr.mxu0 0.0
    %831 = vmatpush1.msra.mxu0 %v133
    %832 = vmatprep.subr.mxu0 0.0
    %833 = vmatpush1.msra.mxu0 %v134
    %834 = vmatprep.subr.mxu0 0.0
    %835 = vmatpush1.msra.mxu0 %v135
    %836 = vmatprep.subr.mxu0 0.0
    %837 = vmatpush1.msra.mxu0 %v136
    %838 = vmatprep.subr.mxu0 0.0
    %839 = vmatpush1.msra.mxu0 %v137
    %840 = vmatprep.subr.mxu0 0.0
    %841 = vmatpush1.msra.mxu0 %v138
    %842 = vmatprep.subr.mxu0 0.0
    %843 = vmatpush1.msra.mxu0 %v139
    %844 = vmatprep.subr.mxu0 0.0
    %845 = vmatpush1.msra.mxu0 %v140
    %846 = vmatprep.subr.mxu0 0.0
    %847 = vmatpush1.msra.mxu0 %v141
    %848 = vmatprep.subr.mxu0 0.0
    %849 = vmatpush1.msra.mxu0 %v142
    %850 = vmatprep.subr.mxu0 0.0
    %851 = vmatpush1.msra.mxu0 %v143
    %852 = vmatprep.subr.mxu0 0.0
    %853 = vmatpush1.msra.mxu0 %v144
    %854 = vmatprep.subr.mxu0 0.0
    %855 = vmatpush1.msra.mxu0 %v145
    %856 = vmatprep.mubr.f32.mxu0 %v642
    %857 = vmatmul.mubr.f32.gmra.mrb[0].mxu0 %v634
    %v858 = vpop.f32.mrb[0].mxu0
    %v859 = vadd.f32 %v789, %v858
    %v860 = vpop.f32.mrb[0].mxu0
    %861 = vdwg.mxu0
    %862 = vmatprep.subr.mxu0 0.0
    %863 = vmatpush1.msra.mxu0 %v146
    %864 = vmatprep.subr.mxu0 0.0
    %865 = vmatpush1.msra.mxu0 %v147
    %866 = vmatprep.subr.mxu0 0.0
    %867 = vmatpush1.msra.mxu0 %v148
    %868 = vmatprep.subr.mxu0 0.0
    %869 = vmatpush1.msra.mxu0 %v149
    %870 = vmatprep.subr.mxu0 0.0
    %871 = vmatpush1.msra.mxu0 %v150
    %872 = vmatprep.subr.mxu0 0.0
    %873 = vmatpush1.msra.mxu0 %v151
    %874 = vmatprep.subr.mxu0 0.0
    %875 = vmatpush1.msra.mxu0 %v152
    %876 = vmatprep.subr.mxu0 0.0
    %877 = vmatpush1.msra.mxu0 %v153
    %878 = vmatprep.subr.mxu0 0.0
    %879 = vmatpush1.msra.mxu0 %v154
    %880 = vmatprep.subr.mxu0 0.0
    %881 = vmatpush1.msra.mxu0 %v155
    %882 = vmatprep.subr.mxu0 0.0
    %883 = vmatpush1.msra.mxu0 %v156
    %884 = vmatprep.subr.mxu0 0.0
    %885 = vmatpush1.msra.mxu0 %v157
    %886 = vmatprep.subr.mxu0 0.0
    %887 = vmatpush1.msra.mxu0 %v158
    %888 = vmatprep.subr.mxu0 0.0
    %889 = vmatpush1.msra.mxu0 %v159
    %890 = vmatprep.subr.mxu0 0.0
    %891 = vmatpush1.msra.mxu0 %v160
    %892 = vmatprep.subr.mxu0 0.0
    %893 = vmatpush1.msra.mxu0 %v161
    %894 = vmatprep.subr.mxu0 0.0
    %895 = vmatpush1.msra.mxu0 %v162
    %896 = vmatprep.subr.mxu0 0.0
    %897 = vmatpush1.msra.mxu0 %v163
    %898 = vmatprep.subr.mxu0 0.0
    %899 = vmatpush1.msra.mxu0 %v164
    %900 = vmatprep.subr.mxu0 0.0
    %901 = vmatpush1.msra.mxu0 %v165
    %902 = vmatprep.subr.mxu0 0.0
    %903 = vmatpush1.msra.mxu0 %v166
    %904 = vmatprep.subr.mxu0 0.0
    %905 = vmatpush1.msra.mxu0 %v167
    %906 = vmatprep.subr.mxu0 0.0
    %907 = vmatpush1.msra.mxu0 %v168
    %908 = vmatprep.subr.mxu0 0.0
    %909 = vmatpush1.msra.mxu0 %v169
    %910 = vmatprep.subr.mxu0 0.0
    %911 = vmatpush1.msra.mxu0 %v170
    %912 = vmatprep.subr.mxu0 0.0
    %913 = vmatpush1.msra.mxu0 %v171
    %914 = vmatprep.subr.mxu0 0.0
    %915 = vmatpush1.msra.mxu0 %v172
    %916 = vmatprep.subr.mxu0 0.0
    %917 = vmatpush1.msra.mxu0 %v173
    %918 = vmatprep.subr.mxu0 0.0
    %919 = vmatpush1.msra.mxu0 %v174
    %920 = vmatprep.subr.mxu0 0.0
    %921 = vmatpush1.msra.mxu0 %v175
    %922 = vmatprep.subr.mxu0 0.0
    %923 = vmatpush1.msra.mxu0 %v176
    %924 = vmatprep.subr.mxu0 0.0
    %925 = vmatpush1.msra.mxu0 %v177
    %926 = vmatprep.mubr.f32.mxu0 %v643
    %927 = vmatmul.mubr.f32.gmra.mrb[0].mxu0 %v641
    %v928 = vpop.f32.mrb[0].mxu0
    %v929 = vadd.f32 %v859, %v928
    %v930 = vpop.f32.mrb[0].mxu0
    %931 = vdwg.mxu0
    %v932 = vmax.f32 %v929, 0.0
    %933 = vmatprep.subr.mxu0 0.0
    %934 = vmatpush1.msra.mxu0 %v179
    %935 = vmatprep.subr.mxu0 0.0
    %936 = vmatpush1.msra.mxu0 %v180
    %937 = vmatprep.subr.mxu0 0.0
    %938 = vmatpush1.msra.mxu0 %v181
    %939 = vmatprep.subr.mxu0 0.0
    %940 = vmatpush1.msra.mxu0 %v182
    %941 = vmatprep.subr.mxu0 0.0
    %942 = vmatpush1.msra.mxu0 %v183
    %943 = vmatprep.subr.mxu0 0.0
    %944 = vmatpush1.msra.mxu0 %v184
    %945 = vmatprep.subr.mxu0 0.0
    %946 = vmatpush1.msra.mxu0 %v185
    %947 = vmatprep.subr.mxu0 0.0
    %948 = vmatpush1.msra.mxu0 %v186
    %949 = vmatprep.subr.mxu0 0.0
    %950 = vmatpush1.msra.mxu0 %v187
    %951 = vmatprep.subr.mxu0 0.0
    %952 = vmatpush1.msra.mxu0 %v188
    %953 = vmatprep.subr.mxu0 0.0
    %954 = vmatpush1.msra.mxu0 %v189
    %955 = vmatprep.subr.mxu0 0.0
    %956 = vmatpush1.msra.mxu0 %v190
    %957 = vmatprep.subr.mxu0 0.0
    %958 = vmatpush1.msra.mxu0 %v191
    %959 = vmatprep.subr.mxu0 0.0
    %960 = vmatpush1.msra.mxu0 %v192
    %961 = vmatprep.subr.mxu0 0.0
    %962 = vmatpush1.msra.mxu0 %v193
    %963 = vmatprep.subr.mxu0 0.0
    %964 = vmatpush1.msra.mxu0 %v194
    %965 = vmatprep.subr.mxu0 0.0
    %966 = vmatpush1.msra.mxu0 0.0
    %967 = vmatprep.subr.mxu0 0.0
    %968 = vmatpush1.msra.mxu0 0.0
    %969 = vmatprep.subr.mxu0 0.0
    %970 = vmatpush1.msra.mxu0 0.0
    %971 = vmatprep.subr.mxu0 0.0
    %972 = vmatpush1.msra.mxu0 0.0
    %973 = vmatprep.subr.mxu0 0.0
    %974 = vmatpush1.msra.mxu0 0.0
    %975 = vmatprep.subr.mxu0 0.0
    %976 = vmatpush1.msra.mxu0 0.0
    %977 = vmatprep.subr.mxu0 0.0
    %978 = vmatpush1.msra.mxu0 0.0
    %979 = vmatprep.subr.mxu0 0.0
    %980 = vmatpush1.msra.mxu0 0.0
    %981 = vmatprep.subr.mxu0 0.0
    %982 = vmatpush1.msra.mxu0 0.0
    %983 = vmatprep.subr.mxu0 0.0
    %984 = vmatpush1.msra.mxu0 0.0
    %985 = vmatprep.subr.mxu0 0.0
    %986 = vmatpush1.msra.mxu0 0.0
    %987 = vmatprep.subr.mxu0 0.0
    %988 = vmatpush1.msra.mxu0 0.0
    %989 = vmatprep.subr.mxu0 0.0
    %990 = vmatpush1.msra.mxu0 0.0
    %991 = vmatprep.subr.mxu0 0.0
    %992 = vmatpush1.msra.mxu0 0.0
    %993 = vmatprep.subr.mxu0 0.0
    %994 = vmatpush1.msra.mxu0 0.0
    %995 = vmatprep.subr.mxu0 0.0
    %996 = vmatpush1.msra.mxu0 0.0
    %997 = vmatprep.mubr.f32.mxu0 0.0
    %998 = vmatmul.mubr.f32.gmra.mrb[0].mxu0 %v932
    %v999 = vpop.f32.mrb[0].mxu0
    %v1000 = vadd.f32 %v533, %v999
    %v1001 = vpop.f32.mrb[0].mxu0
    %1002 = vdwg.mxu0
    %1003 = vst [vmem:[#allocation6] sm:$0x3] %v1000
    %v1004 = vld [vmem:[%s2] sm:$0xff]
    %v1005 = vld [vmem:[%s2 + $0x8] sm:$0xff]
    %v1008 = vcombine.high %v1004, %v1004
    %v1010 = vunpack.c.l.s4 1983009808
    %v1011 = vunpack.c.0.s8 %v1010
    %v1012 = vlaneseq
    %v1013 = vshrl.u32 %v1012, 7
    %v1014 = vsub.s32 %v1011, %v1013
    %v1015 = vrot.slane %v1004, %v1014
    %v1017 = vunpack.c.l.s4 1983009808
    %v1018 = vunpack.c.0.s8 %v1017
    %v1019 = vlaneseq
    %v1020 = vshrl.u32 %v1019, 7
    %v1021 = vsub.s32 %v1018, %v1020
    %v1022 = vrot.slane %v1008, %v1021
    %v1023 = vcombine.high %v1015, %v1015
    %v1024 = vcombine.high %v1022, %v1022
    %v1025 = vcombine.high %v1005, %v1005
    %v1027 = vunpack.c.l.s4 1983009808
    %v1028 = vunpack.c.0.s8 %v1027
    %v1029 = vlaneseq
    %v1030 = vshrl.u32 %v1029, 7
    %v1031 = vsub.s32 %v1028, %v1030
    %v1032 = vrot.slane %v1005, %v1031
    %v1034 = vunpack.c.l.s4 1983009808
    %v1035 = vunpack.c.0.s8 %v1034
    %v1036 = vlaneseq
    %v1037 = vshrl.u32 %v1036, 7
    %v1038 = vsub.s32 %v1035, %v1037
    %v1039 = vrot.slane %v1025, %v1038
    %v1040 = vcombine.high %v1032, %v1032
    %v1041 = vcombine.high %v1039, %v1039
    %1050 = vmatprep.subr.mxu0 0.0
    %1051 = vmatpush1.msra.mxu0 %v50
    %1052 = vmatprep.subr.mxu0 0.0
    %1053 = vmatpush1.msra.mxu0 %v51
    %1054 = vmatprep.subr.mxu0 0.0
    %1055 = vmatpush1.msra.mxu0 %v52
    %1056 = vmatprep.subr.mxu0 0.0
    %1057 = vmatpush1.msra.mxu0 %v53
    %1058 = vmatprep.subr.mxu0 0.0
    %1059 = vmatpush1.msra.mxu0 %v54
    %1060 = vmatprep.subr.mxu0 0.0
    %1061 = vmatpush1.msra.mxu0 %v55
    %1062 = vmatprep.subr.mxu0 0.0
    %1063 = vmatpush1.msra.mxu0 %v56
    %1064 = vmatprep.subr.mxu0 0.0
    %1065 = vmatpush1.msra.mxu0 %v57
    %1066 = vmatprep.subr.mxu0 0.0
    %1067 = vmatpush1.msra.mxu0 %v58
    %1068 = vmatprep.subr.mxu0 0.0
    %1069 = vmatpush1.msra.mxu0 %v59
    %1070 = vmatprep.subr.mxu0 0.0
    %1071 = vmatpush1.msra.mxu0 %v60
    %1072 = vmatprep.subr.mxu0 0.0
    %1073 = vmatpush1.msra.mxu0 %v61
    %1074 = vmatprep.subr.mxu0 0.0
    %1075 = vmatpush1.msra.mxu0 %v62
    %1076 = vmatprep.subr.mxu0 0.0
    %1077 = vmatpush1.msra.mxu0 %v63
    %1078 = vmatprep.subr.mxu0 0.0
    %1079 = vmatpush1.msra.mxu0 %v64
    %1080 = vmatprep.subr.mxu0 0.0
    %1081 = vmatpush1.msra.mxu0 %v65
    %1082 = vmatprep.subr.mxu0 0.0
    %1083 = vmatpush1.msra.mxu0 %v66
    %1084 = vmatprep.subr.mxu0 0.0
    %1085 = vmatpush1.msra.mxu0 %v67
    %1086 = vmatprep.subr.mxu0 0.0
    %1087 = vmatpush1.msra.mxu0 %v68
    %1088 = vmatprep.subr.mxu0 0.0
    %1089 = vmatpush1.msra.mxu0 %v69
    %1090 = vmatprep.subr.mxu0 0.0
    %1091 = vmatpush1.msra.mxu0 %v70
    %1092 = vmatprep.subr.mxu0 0.0
    %1093 = vmatpush1.msra.mxu0 %v71
    %1094 = vmatprep.subr.mxu0 0.0
    %1095 = vmatpush1.msra.mxu0 %v72
    %1096 = vmatprep.subr.mxu0 0.0
    %1097 = vmatpush1.msra.mxu0 %v73
    %1098 = vmatprep.subr.mxu0 0.0
    %1099 = vmatpush1.msra.mxu0 %v74
    %1100 = vmatprep.subr.mxu0 0.0
    %1101 = vmatpush1.msra.mxu0 %v75
    %1102 = vmatprep.subr.mxu0 0.0
    %1103 = vmatpush1.msra.mxu0 %v76
    %1104 = vmatprep.subr.mxu0 0.0
    %1105 = vmatpush1.msra.mxu0 %v77
    %1106 = vmatprep.subr.mxu0 0.0
    %1107 = vmatpush1.msra.mxu0 %v78
    %1108 = vmatprep.subr.mxu0 0.0
    %1109 = vmatpush1.msra.mxu0 %v79
    %1110 = vmatprep.subr.mxu0 0.0
    %1111 = vmatpush1.msra.mxu0 %v80
    %1112 = vmatprep.subr.mxu0 0.0
    %1113 = vmatpush1.msra.mxu0 %v81
    %1114 = vmatprep.mubr.f32.mxu0 %v1023
    %1115 = vmatmul.mubr.f32.gmra.mrb[0].mxu0 %v1015
    %v1116 = vpop.f32.mrb[0].mxu0
    %v1117 = vadd.f32 %v202, %v1116
    %v1118 = vpop.f32.mrb[0].mxu0
    %1119 = vdwg.mxu0
    %1120 = vmatprep.subr.mxu0 0.0
    %1121 = vmatpush1.msra.mxu0 %v82
    %1122 = vmatprep.subr.mxu0 0.0
    %1123 = vmatpush1.msra.mxu0 %v83
    %1124 = vmatprep.subr.mxu0 0.0
    %1125 = vmatpush1.msra.mxu0 %v84
    %1126 = vmatprep.subr.mxu0 0.0
    %1127 = vmatpush1.msra.mxu0 %v85
    %1128 = vmatprep.subr.mxu0 0.0
    %1129 = vmatpush1.msra.mxu0 %v86
    %1130 = vmatprep.subr.mxu0 0.0
    %1131 = vmatpush1.msra.mxu0 %v87
    %1132 = vmatprep.subr.mxu0 0.0
    %1133 = vmatpush1.msra.mxu0 %v88
    %1134 = vmatprep.subr.mxu0 0.0
    %1135 = vmatpush1.msra.mxu0 %v89
    %1136 = vmatprep.subr.mxu0 0.0
    %1137 = vmatpush1.msra.mxu0 %v90
    %1138 = vmatprep.subr.mxu0 0.0
    %1139 = vmatpush1.msra.mxu0 %v91
    %1140 = vmatprep.subr.mxu0 0.0
    %1141 = vmatpush1.msra.mxu0 %v92
    %1142 = vmatprep.subr.mxu0 0.0
    %1143 = vmatpush1.msra.mxu0 %v93
    %1144 = vmatprep.subr.mxu0 0.0
    %1145 = vmatpush1.msra.mxu0 %v94
    %1146 = vmatprep.subr.mxu0 0.0
    %1147 = vmatpush1.msra.mxu0 %v95
    %1148 = vmatprep.subr.mxu0 0.0
    %1149 = vmatpush1.msra.mxu0 %v96
    %1150 = vmatprep.subr.mxu0 0.0
    %1151 = vmatpush1.msra.mxu0 %v97
    %1152 = vmatprep.subr.mxu0 0.0
    %1153 = vmatpush1.msra.mxu0 %v98
    %1154 = vmatprep.subr.mxu0 0.0
    %1155 = vmatpush1.msra.mxu0 %v99
    %1156 = vmatprep.subr.mxu0 0.0
    %1157 = vmatpush1.msra.mxu0 %v100
    %1158 = vmatprep.subr.mxu0 0.0
    %1159 = vmatpush1.msra.mxu0 %v101
    %1160 = vmatprep.subr.mxu0 0.0
    %1161 = vmatpush1.msra.mxu0 %v102
    %1162 = vmatprep.subr.mxu0 0.0
    %1163 = vmatpush1.msra.mxu0 %v103
    %1164 = vmatprep.subr.mxu0 0.0
    %1165 = vmatpush1.msra.mxu0 %v104
    %1166 = vmatprep.subr.mxu0 0.0
    %1167 = vmatpush1.msra.mxu0 %v105
    %1168 = vmatprep.subr.mxu0 0.0
    %1169 = vmatpush1.msra.mxu0 %v106
    %1170 = vmatprep.subr.mxu0 0.0
    %1171 = vmatpush1.msra.mxu0 %v107
    %1172 = vmatprep.subr.mxu0 0.0
    %1173 = vmatpush1.msra.mxu0 %v108
    %1174 = vmatprep.subr.mxu0 0.0
    %1175 = vmatpush1.msra.mxu0 %v109
    %1176 = vmatprep.subr.mxu0 0.0
    %1177 = vmatpush1.msra.mxu0 %v110
    %1178 = vmatprep.subr.mxu0 0.0
    %1179 = vmatpush1.msra.mxu0 %v111
    %1180 = vmatprep.subr.mxu0 0.0
    %1181 = vmatpush1.msra.mxu0 %v112
    %1182 = vmatprep.subr.mxu0 0.0
    %1183 = vmatpush1.msra.mxu0 %v113
    %1184 = vmatprep.mubr.f32.mxu0 %v1024
    %1185 = vmatmul.mubr.f32.gmra.mrb[0].mxu0 %v1022
    %v1186 = vpop.f32.mrb[0].mxu0
    %v1187 = vadd.f32 %v1117, %v1186
    %v1188 = vpop.f32.mrb[0].mxu0
    %1189 = vdwg.mxu0
    %1190 = vmatprep.subr.mxu0 0.0
    %1191 = vmatpush1.msra.mxu0 %v114
    %1192 = vmatprep.subr.mxu0 0.0
    %1193 = vmatpush1.msra.mxu0 %v115
    %1194 = vmatprep.subr.mxu0 0.0
    %1195 = vmatpush1.msra.mxu0 %v116
    %1196 = vmatprep.subr.mxu0 0.0
    %1197 = vmatpush1.msra.mxu0 %v117
    %1198 = vmatprep.subr.mxu0 0.0
    %1199 = vmatpush1.msra.mxu0 %v118
    %1200 = vmatprep.subr.mxu0 0.0
    %1201 = vmatpush1.msra.mxu0 %v119
    %1202 = vmatprep.subr.mxu0 0.0
    %1203 = vmatpush1.msra.mxu0 %v120
    %1204 = vmatprep.subr.mxu0 0.0
    %1205 = vmatpush1.msra.mxu0 %v121
    %1206 = vmatprep.subr.mxu0 0.0
    %1207 = vmatpush1.msra.mxu0 %v122
    %1208 = vmatprep.subr.mxu0 0.0
    %1209 = vmatpush1.msra.mxu0 %v123
    %1210 = vmatprep.subr.mxu0 0.0
    %1211 = vmatpush1.msra.mxu0 %v124
    %1212 = vmatprep.subr.mxu0 0.0
    %1213 = vmatpush1.msra.mxu0 %v125
    %1214 = vmatprep.subr.mxu0 0.0
    %1215 = vmatpush1.msra.mxu0 %v126
    %1216 = vmatprep.subr.mxu0 0.0
    %1217 = vmatpush1.msra.mxu0 %v127
    %1218 = vmatprep.subr.mxu0 0.0
    %1219 = vmatpush1.msra.mxu0 %v128
    %1220 = vmatprep.subr.mxu0 0.0
    %1221 = vmatpush1.msra.mxu0 %v129
    %1222 = vmatprep.subr.mxu0 0.0
    %1223 = vmatpush1.msra.mxu0 %v130
    %1224 = vmatprep.subr.mxu0 0.0
    %1225 = vmatpush1.msra.mxu0 %v131
    %1226 = vmatprep.subr.mxu0 0.0
    %1227 = vmatpush1.msra.mxu0 %v132
    %1228 = vmatprep.subr.mxu0 0.0
    %1229 = vmatpush1.msra.mxu0 %v133
    %1230 = vmatprep.subr.mxu0 0.0
    %1231 = vmatpush1.msra.mxu0 %v134
    %1232 = vmatprep.subr.mxu0 0.0
    %1233 = vmatpush1.msra.mxu0 %v135
    %1234 = vmatprep.subr.mxu0 0.0
    %1235 = vmatpush1.msra.mxu0 %v136
    %1236 = vmatprep.subr.mxu0 0.0
    %1237 = vmatpush1.msra.mxu0 %v137
    %1238 = vmatprep.subr.mxu0 0.0
    %1239 = vmatpush1.msra.mxu0 %v138
    %1240 = vmatprep.subr.mxu0 0.0
    %1241 = vmatpush1.msra.mxu0 %v139
    %1242 = vmatprep.subr.mxu0 0.0
    %1243 = vmatpush1.msra.mxu0 %v140
    %1244 = vmatprep.subr.mxu0 0.0
    %1245 = vmatpush1.msra.mxu0 %v141
    %1246 = vmatprep.subr.mxu0 0.0
    %1247 = vmatpush1.msra.mxu0 %v142
    %1248 = vmatprep.subr.mxu0 0.0
    %1249 = vmatpush1.msra.mxu0 %v143
    %1250 = vmatprep.subr.mxu0 0.0
    %1251 = vmatpush1.msra.mxu0 %v144
    %1252 = vmatprep.subr.mxu0 0.0
    %1253 = vmatpush1.msra.mxu0 %v145
    %1254 = vmatprep.mubr.f32.mxu0 %v1040
    %1255 = vmatmul.mubr.f32.gmra.mrb[0].mxu0 %v1032
    %v1256 = vpop.f32.mrb[0].mxu0
    %v1257 = vadd.f32 %v1187, %v1256
    %v1258 = vpop.f32.mrb[0].mxu0
    %1259 = vdwg.mxu0
    %1260 = vmatprep.subr.mxu0 0.0
    %1261 = vmatpush1.msra.mxu0 %v146
    %1262 = vmatprep.subr.mxu0 0.0
    %1263 = vmatpush1.msra.mxu0 %v147
    %1264 = vmatprep.subr.mxu0 0.0
    %1265 = vmatpush1.msra.mxu0 %v148
    %1266 = vmatprep.subr.mxu0 0.0
    %1267 = vmatpush1.msra.mxu0 %v149
    %1268 = vmatprep.subr.mxu0 0.0
    %1269 = vmatpush1.msra.mxu0 %v150
    %1270 = vmatprep.subr.mxu0 0.0
    %1271 = vmatpush1.msra.mxu0 %v151
    %1272 = vmatprep.subr.mxu0 0.0
    %1273 = vmatpush1.msra.mxu0 %v152
    %1274 = vmatprep.subr.mxu0 0.0
    %1275 = vmatpush1.msra.mxu0 %v153
    %1276 = vmatprep.subr.mxu0 0.0
    %1277 = vmatpush1.msra.mxu0 %v154
    %1278 = vmatprep.subr.mxu0 0.0
    %1279 = vmatpush1.msra.mxu0 %v155
    %1280 = vmatprep.subr.mxu0 0.0
    %1281 = vmatpush1.msra.mxu0 %v156
    %1282 = vmatprep.subr.mxu0 0.0
    %1283 = vmatpush1.msra.mxu0 %v157
    %1284 = vmatprep.subr.mxu0 0.0
    %1285 = vmatpush1.msra.mxu0 %v158
    %1286 = vmatprep.subr.mxu0 0.0
    %1287 = vmatpush1.msra.mxu0 %v159
    %1288 = vmatprep.subr.mxu0 0.0
    %1289 = vmatpush1.msra.mxu0 %v160
    %1290 = vmatprep.subr.mxu0 0.0
    %1291 = vmatpush1.msra.mxu0 %v161
    %1292 = vmatprep.subr.mxu0 0.0
    %1293 = vmatpush1.msra.mxu0 %v162
    %1294 = vmatprep.subr.mxu0 0.0
    %1295 = vmatpush1.msra.mxu0 %v163
    %1296 = vmatprep.subr.mxu0 0.0
    %1297 = vmatpush1.msra.mxu0 %v164
    %1298 = vmatprep.subr.mxu0 0.0
    %1299 = vmatpush1.msra.mxu0 %v165
    %1300 = vmatprep.subr.mxu0 0.0
    %1301 = vmatpush1.msra.mxu0 %v166
    %1302 = vmatprep.subr.mxu0 0.0
    %1303 = vmatpush1.msra.mxu0 %v167
    %1304 = vmatprep.subr.mxu0 0.0
    %1305 = vmatpush1.msra.mxu0 %v168
    %1306 = vmatprep.subr.mxu0 0.0
    %1307 = vmatpush1.msra.mxu0 %v169
    %1308 = vmatprep.subr.mxu0 0.0
    %1309 = vmatpush1.msra.mxu0 %v170
    %1310 = vmatprep.subr.mxu0 0.0
    %1311 = vmatpush1.msra.mxu0 %v171
    %1312 = vmatprep.subr.mxu0 0.0
    %1313 = vmatpush1.msra.mxu0 %v172
    %1314 = vmatprep.subr.mxu0 0.0
    %1315 = vmatpush1.msra.mxu0 %v173
    %1316 = vmatprep.subr.mxu0 0.0
    %1317 = vmatpush1.msra.mxu0 %v174
    %1318 = vmatprep.subr.mxu0 0.0
    %1319 = vmatpush1.msra.mxu0 %v175
    %1320 = vmatprep.subr.mxu0 0.0
    %1321 = vmatpush1.msra.mxu0 %v176
    %1322 = vmatprep.subr.mxu0 0.0
    %1323 = vmatpush1.msra.mxu0 %v177
    %1324 = vmatprep.mubr.f32.mxu0 %v1041
    %1325 = vmatmul.mubr.f32.gmra.mrb[0].mxu0 %v1039
    %v1326 = vpop.f32.mrb[0].mxu0
    %v1327 = vadd.f32 %v1257, %v1326
    %v1328 = vpop.f32.mrb[0].mxu0
    %1329 = vdwg.mxu0
    %v1330 = vmax.f32 %v1327, 0.0
    %1331 = vmatprep.subr.mxu0 0.0
    %1332 = vmatpush1.msra.mxu0 %v179
    %1333 = vmatprep.subr.mxu0 0.0
    %1334 = vmatpush1.msra.mxu0 %v180
    %1335 = vmatprep.subr.mxu0 0.0
    %1336 = vmatpush1.msra.mxu0 %v181
    %1337 = vmatprep.subr.mxu0 0.0
    %1338 = vmatpush1.msra.mxu0 %v182
    %1339 = vmatprep.subr.mxu0 0.0
    %1340 = vmatpush1.msra.mxu0 %v183
    %1341 = vmatprep.subr.mxu0 0.0
    %1342 = vmatpush1.msra.mxu0 %v184
    %1343 = vmatprep.subr.mxu0 0.0
    %1344 = vmatpush1.msra.mxu0 %v185
    %1345 = vmatprep.subr.mxu0 0.0
    %1346 = vmatpush1.msra.mxu0 %v186
    %1347 = vmatprep.subr.mxu0 0.0
    %1348 = vmatpush1.msra.mxu0 %v187
    %1349 = vmatprep.subr.mxu0 0.0
    %1350 = vmatpush1.msra.mxu0 %v188
    %1351 = vmatprep.subr.mxu0 0.0
    %1352 = vmatpush1.msra.mxu0 %v189
    %1353 = vmatprep.subr.mxu0 0.0
    %1354 = vmatpush1.msra.mxu0 %v190
    %1355 = vmatprep.subr.mxu0 0.0
    %1356 = vmatpush1.msra.mxu0 %v191
    %1357 = vmatprep.subr.mxu0 0.0
    %1358 = vmatpush1.msra.mxu0 %v192
    %1359 = vmatprep.subr.mxu0 0.0
    %1360 = vmatpush1.msra.mxu0 %v193
    %1361 = vmatprep.subr.mxu0 0.0
    %1362 = vmatpush1.msra.mxu0 %v194
    %1363 = vmatprep.subr.mxu0 0.0
    %1364 = vmatpush1.msra.mxu0 0.0
    %1365 = vmatprep.subr.mxu0 0.0
    %1366 = vmatpush1.msra.mxu0 0.0
    %1367 = vmatprep.subr.mxu0 0.0
    %1368 = vmatpush1.msra.mxu0 0.0
    %1369 = vmatprep.subr.mxu0 0.0
    %1370 = vmatpush1.msra.mxu0 0.0
    %1371 = vmatprep.subr.mxu0 0.0
    %1372 = vmatpush1.msra.mxu0 0.0
    %1373 = vmatprep.subr.mxu0 0.0
    %1374 = vmatpush1.msra.mxu0 0.0
    %1375 = vmatprep.subr.mxu0 0.0
    %1376 = vmatpush1.msra.mxu0 0.0
    %1377 = vmatprep.subr.mxu0 0.0
    %1378 = vmatpush1.msra.mxu0 0.0
    %1379 = vmatprep.subr.mxu0 0.0
    %1380 = vmatpush1.msra.mxu0 0.0
    %1381 = vmatprep.subr.mxu0 0.0
    %1382 = vmatpush1.msra.mxu0 0.0
    %1383 = vmatprep.subr.mxu0 0.0
    %1384 = vmatpush1.msra.mxu0 0.0
    %1385 = vmatprep.subr.mxu0 0.0
    %1386 = vmatpush1.msra.mxu0 0.0
    %1387 = vmatprep.subr.mxu0 0.0
    %1388 = vmatpush1.msra.mxu0 0.0
    %1389 = vmatprep.subr.mxu0 0.0
    %1390 = vmatpush1.msra.mxu0 0.0
    %1391 = vmatprep.subr.mxu0 0.0
    %1392 = vmatpush1.msra.mxu0 0.0
    %1393 = vmatprep.subr.mxu0 0.0
    %1394 = vmatpush1.msra.mxu0 0.0
    %1395 = vmatprep.mubr.f32.mxu0 0.0
    %1396 = vmatmul.mubr.f32.gmra.mrb[0].mxu0 %v1330
    %v1397 = vpop.f32.mrb[0].mxu0
    %v1398 = vadd.f32 %v533, %v1397
    %v1399 = vpop.f32.mrb[0].mxu0
    %1400 = vdwg.mxu0
    %1401 = vst [vmem:[#allocation8] sm:$0x3] %v1398
    %v1402 = vld [vmem:[%s3] sm:$0xff]
    %v1403 = vld [vmem:[%s3 + $0x8] sm:$0xff]
    %v1406 = vcombine.high %v1402, %v1402
    %v1408 = vunpack.c.l.s4 1983009808
    %v1409 = vunpack.c.0.s8 %v1408
    %v1410 = vlaneseq
    %v1411 = vshrl.u32 %v1410, 7
    %v1412 = vsub.s32 %v1409, %v1411
    %v1413 = vrot.slane %v1402, %v1412
    %v1415 = vunpack.c.l.s4 1983009808
    %v1416 = vunpack.c.0.s8 %v1415
    %v1417 = vlaneseq
    %v1418 = vshrl.u32 %v1417, 7
    %v1419 = vsub.s32 %v1416, %v1418
    %v1420 = vrot.slane %v1406, %v1419
    %v1421 = vcombine.high %v1413, %v1413
    %v1422 = vcombine.high %v1420, %v1420
    %v1423 = vcombine.high %v1403, %v1403
    %v1425 = vunpack.c.l.s4 1983009808
    %v1426 = vunpack.c.0.s8 %v1425
    %v1427 = vlaneseq
    %v1428 = vshrl.u32 %v1427, 7
    %v1429 = vsub.s32 %v1426, %v1428
    %v1430 = vrot.slane %v1403, %v1429
    %v1432 = vunpack.c.l.s4 1983009808
    %v1433 = vunpack.c.0.s8 %v1432
    %v1434 = vlaneseq
    %v1435 = vshrl.u32 %v1434, 7
    %v1436 = vsub.s32 %v1433, %v1435
    %v1437 = vrot.slane %v1423, %v1436
    %v1438 = vcombine.high %v1430, %v1430
    %v1439 = vcombine.high %v1437, %v1437
    %1448 = vmatprep.subr.mxu0 0.0
    %1449 = vmatpush1.msra.mxu0 %v50
    %1450 = vmatprep.subr.mxu0 0.0
    %1451 = vmatpush1.msra.mxu0 %v51
    %1452 = vmatprep.subr.mxu0 0.0
    %1453 = vmatpush1.msra.mxu0 %v52
    %1454 = vmatprep.subr.mxu0 0.0
    %1455 = vmatpush1.msra.mxu0 %v53
    %1456 = vmatprep.subr.mxu0 0.0
    %1457 = vmatpush1.msra.mxu0 %v54
    %1458 = vmatprep.subr.mxu0 0.0
    %1459 = vmatpush1.msra.mxu0 %v55
    %1460 = vmatprep.subr.mxu0 0.0
    %1461 = vmatpush1.msra.mxu0 %v56
    %1462 = vmatprep.subr.mxu0 0.0
    %1463 = vmatpush1.msra.mxu0 %v57
    %1464 = vmatprep.subr.mxu0 0.0
    %1465 = vmatpush1.msra.mxu0 %v58
    %1466 = vmatprep.subr.mxu0 0.0
    %1467 = vmatpush1.msra.mxu0 %v59
    %1468 = vmatprep.subr.mxu0 0.0
    %1469 = vmatpush1.msra.mxu0 %v60
    %1470 = vmatprep.subr.mxu0 0.0
    %1471 = vmatpush1.msra.mxu0 %v61
    %1472 = vmatprep.subr.mxu0 0.0
    %1473 = vmatpush1.msra.mxu0 %v62
    %1474 = vmatprep.subr.mxu0 0.0
    %1475 = vmatpush1.msra.mxu0 %v63
    %1476 = vmatprep.subr.mxu0 0.0
    %1477 = vmatpush1.msra.mxu0 %v64
    %1478 = vmatprep.subr.mxu0 0.0
    %1479 = vmatpush1.msra.mxu0 %v65
    %1480 = vmatprep.subr.mxu0 0.0
    %1481 = vmatpush1.msra.mxu0 %v66
    %1482 = vmatprep.subr.mxu0 0.0
    %1483 = vmatpush1.msra.mxu0 %v67
    %1484 = vmatprep.subr.mxu0 0.0
    %1485 = vmatpush1.msra.mxu0 %v68
    %1486 = vmatprep.subr.mxu0 0.0
    %1487 = vmatpush1.msra.mxu0 %v69
    %1488 = vmatprep.subr.mxu0 0.0
    %1489 = vmatpush1.msra.mxu0 %v70
    %1490 = vmatprep.subr.mxu0 0.0
    %1491 = vmatpush1.msra.mxu0 %v71
    %1492 = vmatprep.subr.mxu0 0.0
    %1493 = vmatpush1.msra.mxu0 %v72
    %1494 = vmatprep.subr.mxu0 0.0
    %1495 = vmatpush1.msra.mxu0 %v73
    %1496 = vmatprep.subr.mxu0 0.0
    %1497 = vmatpush1.msra.mxu0 %v74
    %1498 = vmatprep.subr.mxu0 0.0
    %1499 = vmatpush1.msra.mxu0 %v75
    %1500 = vmatprep.subr.mxu0 0.0
    %1501 = vmatpush1.msra.mxu0 %v76
    %1502 = vmatprep.subr.mxu0 0.0
    %1503 = vmatpush1.msra.mxu0 %v77
    %1504 = vmatprep.subr.mxu0 0.0
    %1505 = vmatpush1.msra.mxu0 %v78
    %1506 = vmatprep.subr.mxu0 0.0
    %1507 = vmatpush1.msra.mxu0 %v79
    %1508 = vmatprep.subr.mxu0 0.0
    %1509 = vmatpush1.msra.mxu0 %v80
    %1510 = vmatprep.subr.mxu0 0.0
    %1511 = vmatpush1.msra.mxu0 %v81
    %1512 = vmatprep.mubr.f32.mxu0 %v1421
    %1513 = vmatmul.mubr.f32.gmra.mrb[0].mxu0 %v1413
    %v1514 = vpop.f32.mrb[0].mxu0
    %v1515 = vadd.f32 %v202, %v1514
    %v1516 = vpop.f32.mrb[0].mxu0
    %1517 = vdwg.mxu0
    %1518 = vmatprep.subr.mxu0 0.0
    %1519 = vmatpush1.msra.mxu0 %v82
    %1520 = vmatprep.subr.mxu0 0.0
    %1521 = vmatpush1.msra.mxu0 %v83
    %1522 = vmatprep.subr.mxu0 0.0
    %1523 = vmatpush1.msra.mxu0 %v84
    %1524 = vmatprep.subr.mxu0 0.0
    %1525 = vmatpush1.msra.mxu0 %v85
    %1526 = vmatprep.subr.mxu0 0.0
    %1527 = vmatpush1.msra.mxu0 %v86
    %1528 = vmatprep.subr.mxu0 0.0
    %1529 = vmatpush1.msra.mxu0 %v87
    %1530 = vmatprep.subr.mxu0 0.0
    %1531 = vmatpush1.msra.mxu0 %v88
    %1532 = vmatprep.subr.mxu0 0.0
    %1533 = vmatpush1.msra.mxu0 %v89
    %1534 = vmatprep.subr.mxu0 0.0
    %1535 = vmatpush1.msra.mxu0 %v90
    %1536 = vmatprep.subr.mxu0 0.0
    %1537 = vmatpush1.msra.mxu0 %v91
    %1538 = vmatprep.subr.mxu0 0.0
    %1539 = vmatpush1.msra.mxu0 %v92
    %1540 = vmatprep.subr.mxu0 0.0
    %1541 = vmatpush1.msra.mxu0 %v93
    %1542 = vmatprep.subr.mxu0 0.0
    %1543 = vmatpush1.msra.mxu0 %v94
    %1544 = vmatprep.subr.mxu0 0.0
    %1545 = vmatpush1.msra.mxu0 %v95
    %1546 = vmatprep.subr.mxu0 0.0
    %1547 = vmatpush1.msra.mxu0 %v96
    %1548 = vmatprep.subr.mxu0 0.0
    %1549 = vmatpush1.msra.mxu0 %v97
    %1550 = vmatprep.subr.mxu0 0.0
    %1551 = vmatpush1.msra.mxu0 %v98
    %1552 = vmatprep.subr.mxu0 0.0
    %1553 = vmatpush1.msra.mxu0 %v99
    %1554 = vmatprep.subr.mxu0 0.0
    %1555 = vmatpush1.msra.mxu0 %v100
    %1556 = vmatprep.subr.mxu0 0.0
    %1557 = vmatpush1.msra.mxu0 %v101
    %1558 = vmatprep.subr.mxu0 0.0
    %1559 = vmatpush1.msra.mxu0 %v102
    %1560 = vmatprep.subr.mxu0 0.0
    %1561 = vmatpush1.msra.mxu0 %v103
    %1562 = vmatprep.subr.mxu0 0.0
    %1563 = vmatpush1.msra.mxu0 %v104
    %1564 = vmatprep.subr.mxu0 0.0
    %1565 = vmatpush1.msra.mxu0 %v105
    %1566 = vmatprep.subr.mxu0 0.0
    %1567 = vmatpush1.msra.mxu0 %v106
    %1568 = vmatprep.subr.mxu0 0.0
    %1569 = vmatpush1.msra.mxu0 %v107
    %1570 = vmatprep.subr.mxu0 0.0
    %1571 = vmatpush1.msra.mxu0 %v108
    %1572 = vmatprep.subr.mxu0 0.0
    %1573 = vmatpush1.msra.mxu0 %v109
    %1574 = vmatprep.subr.mxu0 0.0
    %1575 = vmatpush1.msra.mxu0 %v110
    %1576 = vmatprep.subr.mxu0 0.0
    %1577 = vmatpush1.msra.mxu0 %v111
    %1578 = vmatprep.subr.mxu0 0.0
    %1579 = vmatpush1.msra.mxu0 %v112
    %1580 = vmatprep.subr.mxu0 0.0
    %1581 = vmatpush1.msra.mxu0 %v113
    %1582 = vmatprep.mubr.f32.mxu0 %v1422
    %1583 = vmatmul.mubr.f32.gmra.mrb[0].mxu0 %v1420
    %v1584 = vpop.f32.mrb[0].mxu0
    %v1585 = vadd.f32 %v1515, %v1584
    %v1586 = vpop.f32.mrb[0].mxu0
    %1587 = vdwg.mxu0
    %1588 = vmatprep.subr.mxu0 0.0
    %1589 = vmatpush1.msra.mxu0 %v114
    %1590 = vmatprep.subr.mxu0 0.0
    %1591 = vmatpush1.msra.mxu0 %v115
    %1592 = vmatprep.subr.mxu0 0.0
    %1593 = vmatpush1.msra.mxu0 %v116
    %1594 = vmatprep.subr.mxu0 0.0
    %1595 = vmatpush1.msra.mxu0 %v117
    %1596 = vmatprep.subr.mxu0 0.0
    %1597 = vmatpush1.msra.mxu0 %v118
    %1598 = vmatprep.subr.mxu0 0.0
    %1599 = vmatpush1.msra.mxu0 %v119
    %1600 = vmatprep.subr.mxu0 0.0
    %1601 = vmatpush1.msra.mxu0 %v120
    %1602 = vmatprep.subr.mxu0 0.0
    %1603 = vmatpush1.msra.mxu0 %v121
    %1604 = vmatprep.subr.mxu0 0.0
    %1605 = vmatpush1.msra.mxu0 %v122
    %1606 = vmatprep.subr.mxu0 0.0
    %1607 = vmatpush1.msra.mxu0 %v123
    %1608 = vmatprep.subr.mxu0 0.0
    %1609 = vmatpush1.msra.mxu0 %v124
    %1610 = vmatprep.subr.mxu0 0.0
    %1611 = vmatpush1.msra.mxu0 %v125
    %1612 = vmatprep.subr.mxu0 0.0
    %1613 = vmatpush1.msra.mxu0 %v126
    %1614 = vmatprep.subr.mxu0 0.0
    %1615 = vmatpush1.msra.mxu0 %v127
    %1616 = vmatprep.subr.mxu0 0.0
    %1617 = vmatpush1.msra.mxu0 %v128
    %1618 = vmatprep.subr.mxu0 0.0
    %1619 = vmatpush1.msra.mxu0 %v129
    %1620 = vmatprep.subr.mxu0 0.0
    %1621 = vmatpush1.msra.mxu0 %v130
    %1622 = vmatprep.subr.mxu0 0.0
    %1623 = vmatpush1.msra.mxu0 %v131
    %1624 = vmatprep.subr.mxu0 0.0
    %1625 = vmatpush1.msra.mxu0 %v132
    %1626 = vmatprep.subr.mxu0 0.0
    %1627 = vmatpush1.msra.mxu0 %v133
    %1628 = vmatprep.subr.mxu0 0.0
    %1629 = vmatpush1.msra.mxu0 %v134
    %1630 = vmatprep.subr.mxu0 0.0
    %1631 = vmatpush1.msra.mxu0 %v135
    %1632 = vmatprep.subr.mxu0 0.0
    %1633 = vmatpush1.msra.mxu0 %v136
    %1634 = vmatprep.subr.mxu0 0.0
    %1635 = vmatpush1.msra.mxu0 %v137
    %1636 = vmatprep.subr.mxu0 0.0
    %1637 = vmatpush1.msra.mxu0 %v138
    %1638 = vmatprep.subr.mxu0 0.0
    %1639 = vmatpush1.msra.mxu0 %v139
    %1640 = vmatprep.subr.mxu0 0.0
    %1641 = vmatpush1.msra.mxu0 %v140
    %1642 = vmatprep.subr.mxu0 0.0
    %1643 = vmatpush1.msra.mxu0 %v141
    %1644 = vmatprep.subr.mxu0 0.0
    %1645 = vmatpush1.msra.mxu0 %v142
    %1646 = vmatprep.subr.mxu0 0.0
    %1647 = vmatpush1.msra.mxu0 %v143
    %1648 = vmatprep.subr.mxu0 0.0
    %1649 = vmatpush1.msra.mxu0 %v144
    %1650 = vmatprep.subr.mxu0 0.0
    %1651 = vmatpush1.msra.mxu0 %v145
    %1652 = vmatprep.mubr.f32.mxu0 %v1438
    %1653 = vmatmul.mubr.f32.gmra.mrb[0].mxu0 %v1430
    %v1654 = vpop.f32.mrb[0].mxu0
    %v1655 = vadd.f32 %v1585, %v1654
    %v1656 = vpop.f32.mrb[0].mxu0
    %1657 = vdwg.mxu0
    %1658 = vmatprep.subr.mxu0 0.0
    %1659 = vmatpush1.msra.mxu0 %v146
    %1660 = vmatprep.subr.mxu0 0.0
    %1661 = vmatpush1.msra.mxu0 %v147
    %1662 = vmatprep.subr.mxu0 0.0
    %1663 = vmatpush1.msra.mxu0 %v148
    %1664 = vmatprep.subr.mxu0 0.0
    %1665 = vmatpush1.msra.mxu0 %v149
    %1666 = vmatprep.subr.mxu0 0.0
    %1667 = vmatpush1.msra.mxu0 %v150
    %1668 = vmatprep.subr.mxu0 0.0
    %1669 = vmatpush1.msra.mxu0 %v151
    %1670 = vmatprep.subr.mxu0 0.0
    %1671 = vmatpush1.msra.mxu0 %v152
    %1672 = vmatprep.subr.mxu0 0.0
    %1673 = vmatpush1.msra.mxu0 %v153
    %1674 = vmatprep.subr.mxu0 0.0
    %1675 = vmatpush1.msra.mxu0 %v154
    %1676 = vmatprep.subr.mxu0 0.0
    %1677 = vmatpush1.msra.mxu0 %v155
    %1678 = vmatprep.subr.mxu0 0.0
    %1679 = vmatpush1.msra.mxu0 %v156
    %1680 = vmatprep.subr.mxu0 0.0
    %1681 = vmatpush1.msra.mxu0 %v157
    %1682 = vmatprep.subr.mxu0 0.0
    %1683 = vmatpush1.msra.mxu0 %v158
    %1684 = vmatprep.subr.mxu0 0.0
    %1685 = vmatpush1.msra.mxu0 %v159
    %1686 = vmatprep.subr.mxu0 0.0
    %1687 = vmatpush1.msra.mxu0 %v160
    %1688 = vmatprep.subr.mxu0 0.0
    %1689 = vmatpush1.msra.mxu0 %v161
    %1690 = vmatprep.subr.mxu0 0.0
    %1691 = vmatpush1.msra.mxu0 %v162
    %1692 = vmatprep.subr.mxu0 0.0
    %1693 = vmatpush1.msra.mxu0 %v163
    %1694 = vmatprep.subr.mxu0 0.0
    %1695 = vmatpush1.msra.mxu0 %v164
    %1696 = vmatprep.subr.mxu0 0.0
    %1697 = vmatpush1.msra.mxu0 %v165
    %1698 = vmatprep.subr.mxu0 0.0
    %1699 = vmatpush1.msra.mxu0 %v166
    %1700 = vmatprep.subr.mxu0 0.0
    %1701 = vmatpush1.msra.mxu0 %v167
    %1702 = vmatprep.subr.mxu0 0.0
    %1703 = vmatpush1.msra.mxu0 %v168
    %1704 = vmatprep.subr.mxu0 0.0
    %1705 = vmatpush1.msra.mxu0 %v169
    %1706 = vmatprep.subr.mxu0 0.0
    %1707 = vmatpush1.msra.mxu0 %v170
    %1708 = vmatprep.subr.mxu0 0.0
    %1709 = vmatpush1.msra.mxu0 %v171
    %1710 = vmatprep.subr.mxu0 0.0
    %1711 = vmatpush1.msra.mxu0 %v172
    %1712 = vmatprep.subr.mxu0 0.0
    %1713 = vmatpush1.msra.mxu0 %v173
    %1714 = vmatprep.subr.mxu0 0.0
    %1715 = vmatpush1.msra.mxu0 %v174
    %1716 = vmatprep.subr.mxu0 0.0
    %1717 = vmatpush1.msra.mxu0 %v175
    %1718 = vmatprep.subr.mxu0 0.0
    %1719 = vmatpush1.msra.mxu0 %v176
    %1720 = vmatprep.subr.mxu0 0.0
    %1721 = vmatpush1.msra.mxu0 %v177
    %1722 = vmatprep.mubr.f32.mxu0 %v1439
    %1723 = vmatmul.mubr.f32.gmra.mrb[0].mxu0 %v1437
    %v1724 = vpop.f32.mrb[0].mxu0
    %v1725 = vadd.f32 %v1655, %v1724
    %v1726 = vpop.f32.mrb[0].mxu0
    %1727 = vdwg.mxu0
    %v1728 = vmax.f32 %v1725, 0.0
    %1729 = vmatprep.subr.mxu0 0.0
    %1730 = vmatpush1.msra.mxu0 %v179
    %1731 = vmatprep.subr.mxu0 0.0
    %1732 = vmatpush1.msra.mxu0 %v180
    %1733 = vmatprep.subr.mxu0 0.0
    %1734 = vmatpush1.msra.mxu0 %v181
    %1735 = vmatprep.subr.mxu0 0.0
    %1736 = vmatpush1.msra.mxu0 %v182
    %1737 = vmatprep.subr.mxu0 0.0
    %1738 = vmatpush1.msra.mxu0 %v183
    %1739 = vmatprep.subr.mxu0 0.0
    %1740 = vmatpush1.msra.mxu0 %v184
    %1741 = vmatprep.subr.mxu0 0.0
    %1742 = vmatpush1.msra.mxu0 %v185
    %1743 = vmatprep.subr.mxu0 0.0
    %1744 = vmatpush1.msra.mxu0 %v186
    %1745 = vmatprep.subr.mxu0 0.0
    %1746 = vmatpush1.msra.mxu0 %v187
    %1747 = vmatprep.subr.mxu0 0.0
    %1748 = vmatpush1.msra.mxu0 %v188
    %1749 = vmatprep.subr.mxu0 0.0
    %1750 = vmatpush1.msra.mxu0 %v189
    %1751 = vmatprep.subr.mxu0 0.0
    %1752 = vmatpush1.msra.mxu0 %v190
    %1753 = vmatprep.subr.mxu0 0.0
    %1754 = vmatpush1.msra.mxu0 %v191
    %1755 = vmatprep.subr.mxu0 0.0
    %1756 = vmatpush1.msra.mxu0 %v192
    %1757 = vmatprep.subr.mxu0 0.0
    %1758 = vmatpush1.msra.mxu0 %v193
    %1759 = vmatprep.subr.mxu0 0.0
    %1760 = vmatpush1.msra.mxu0 %v194
    %1761 = vmatprep.subr.mxu0 0.0
    %1762 = vmatpush1.msra.mxu0 0.0
    %1763 = vmatprep.subr.mxu0 0.0
    %1764 = vmatpush1.msra.mxu0 0.0
    %1765 = vmatprep.subr.mxu0 0.0
    %1766 = vmatpush1.msra.mxu0 0.0
    %1767 = vmatprep.subr.mxu0 0.0
    %1768 = vmatpush1.msra.mxu0 0.0
    %1769 = vmatprep.subr.mxu0 0.0
    %1770 = vmatpush1.msra.mxu0 0.0
    %1771 = vmatprep.subr.mxu0 0.0
    %1772 = vmatpush1.msra.mxu0 0.0
    %1773 = vmatprep.subr.mxu0 0.0
    %1774 = vmatpush1.msra.mxu0 0.0
    %1775 = vmatprep.subr.mxu0 0.0
    %1776 = vmatpush1.msra.mxu0 0.0
    %1777 = vmatprep.subr.mxu0 0.0
    %1778 = vmatpush1.msra.mxu0 0.0
    %1779 = vmatprep.subr.mxu0 0.0
    %1780 = vmatpush1.msra.mxu0 0.0
    %1781 = vmatprep.subr.mxu0 0.0
    %1782 = vmatpush1.msra.mxu0 0.0
    %1783 = vmatprep.subr.mxu0 0.0
    %1784 = vmatpush1.msra.mxu0 0.0
    %1785 = vmatprep.subr.mxu0 0.0
    %1786 = vmatpush1.msra.mxu0 0.0
    %1787 = vmatprep.subr.mxu0 0.0
    %1788 = vmatpush1.msra.mxu0 0.0
    %1789 = vmatprep.subr.mxu0 0.0
    %1790 = vmatpush1.msra.mxu0 0.0
    %1791 = vmatprep.subr.mxu0 0.0
    %1792 = vmatpush1.msra.mxu0 0.0
    %1793 = vmatprep.mubr.f32.mxu0 0.0
    %1794 = vmatmul.mubr.f32.gmra.mrb[0].mxu0 %v1728
    %v1795 = vpop.f32.mrb[0].mxu0
    %v1796 = vadd.f32 %v533, %v1795
    %v1797 = vpop.f32.mrb[0].mxu0
    %1798 = vdwg.mxu0
    %1799 = vst [vmem:[#allocation9] sm:$0x3] %v1796
    // Predicated region
    $region38: #{quadruplet_forward.1} parent=1 // pred_check
      _
    $region39: #{quadruplet_forward.1} parent=1 // pred_check_branch
      %1801 = sbr.rel (0) target = $region41
    $region40: #{quadruplet_forward.1} parent=1 // pred_region
      %s1803 = ssub.s32 32, 32
      %1804 = vsyncadd [#allocation4], %s1803
      %s1806 = sshll.u32 [#allocation5], 4
      %s1807 = int_to_ptr.vmem [resolvable:$true] %s1806
      %1809 = dma.vmem_to_hbm [thread:$0]  %s1807, 32, %s8, [#allocation4]
    $region41: #{quadruplet_forward.1} parent=1 // pred_fallthru
      _
    // Predicated region
    $region42: #{quadruplet_forward.1} parent=1 // pred_check
      _
    $region43: #{quadruplet_forward.1} parent=1 // pred_check_branch
      %1811 = sbr.rel (0) target = $region45
    $region44: #{quadruplet_forward.1} parent=1 // pred_region
      %s1813 = ssub.s32 32, 32
      %1814 = vsyncadd [#allocation7], %s1813
      %s1816 = sshll.u32 [#allocation6], 4
      %s1817 = int_to_ptr.vmem [resolvable:$true] %s1816
      %1819 = dma.vmem_to_hbm [thread:$0]  %s1817, 32, %s9, [#allocation7]
    $region45: #{quadruplet_forward.1} parent=1 // pred_fallthru
      _
    // Predicated region
    $region46: #{quadruplet_forward.1} parent=1 // pred_check
      _
    $region47: #{quadruplet_forward.1} parent=1 // pred_check_branch
      %1821 = sbr.rel (0) target = $region49
    $region48: #{quadruplet_forward.1} parent=1 // pred_region
      %s1823 = ssub.s32 32, 32
      %1824 = vsyncadd [#allocation7], %s1823
      %s1826 = sshll.u32 [#allocation8], 4
      %s1827 = int_to_ptr.vmem [resolvable:$true] %s1826
      %1829 = dma.vmem_to_hbm [thread:$0]  %s1827, 32, %s10, [#allocation7]
    $region49: #{quadruplet_forward.1} parent=1 // pred_fallthru
      _
    // Predicated region
    $region50: #{quadruplet_forward.1} parent=1 // pred_check
      _
    $region51: #{quadruplet_forward.1} parent=1 // pred_check_branch
      %1831 = sbr.rel (0) target = $region53
    $region52: #{quadruplet_forward.1} parent=1 // pred_region
      %s1833 = ssub.s32 32, 32
      %1834 = vsyncadd [#allocation10], %s1833
      %s1836 = sshll.u32 [#allocation9], 4
      %s1837 = int_to_ptr.vmem [resolvable:$true] %s1836
      %1839 = dma.vmem_to_hbm [thread:$0]  %s1837, 32, %s11, [#allocation10]
    $region53: #{quadruplet_forward.1} parent=1 // pred_fallthru
      _
    // Predicated region
    $region54: #{quadruplet_forward.1} parent=1 // pred_check
      _
    $region55: #{quadruplet_forward.1} parent=1 // pred_check_branch
      %1841 = sbr.rel (0) target = $region57
    $region56: #{quadruplet_forward.1} parent=1 // pred_region
      %1842 = dma.done [#allocation4], 32
    $region57: #{quadruplet_forward.1} parent=1 // pred_fallthru
      _
    // Predicated region
    $region58: #{quadruplet_forward.1} parent=1 // pred_check
      _
    $region59: #{quadruplet_forward.1} parent=1 // pred_check_branch
      %1844 = sbr.rel (0) target = $region61
    $region60: #{quadruplet_forward.1} parent=1 // pred_region
      %1845 = dma.done [#allocation7], 32
    $region61: #{quadruplet_forward.1} parent=1 // pred_fallthru
      _
    // Predicated region
    $region62: #{quadruplet_forward.1} parent=1 // pred_check
      _
    $region63: #{quadruplet_forward.1} parent=1 // pred_check_branch
      %1847 = sbr.rel (0) target = $region65
    $region64: #{quadruplet_forward.1} parent=1 // pred_region
      %1848 = dma.done [#allocation7], 32
    $region65: #{quadruplet_forward.1} parent=1 // pred_fallthru
      _
    // Predicated region
    $region66: #{quadruplet_forward.1} parent=1 // pred_check
      _
    $region67: #{quadruplet_forward.1} parent=1 // pred_check_branch
      %1850 = sbr.rel (0) target = $region69
    $region68: #{quadruplet_forward.1} parent=1 // pred_region
      %1851 = dma.done [#allocation10], 32
    $region69: #{quadruplet_forward.1} parent=1 // pred_fallthru
      _
    %1852 = vsyncpa [#allocation3], 1
    %1853 = vsyncpa [#allocation4], 1
    %1854 = vsyncpa [#allocation7], 1
    %1855 = vsyncpa [#allocation10], 1

</llo_original>
